<compile_context>
chip_gen: v7x
topology: tpu7x:2x2x1
jax: 0.10.0
libtpu: 0.0.40
codegen_flags: <defaults>
</compile_context>

<pallas_src>
import functools

import jax
import jax.numpy as jnp
from jax import lax
from jax.experimental import pallas as pl
from jax.experimental.pallas import tpu as pltpu


def _lstm_tagger_kernel(ids_ref, emb_ref, w_ih_ref, w_hh_ref, b_ref,
                        w_tag_ref, b_tag_ref, out_ref, pre_gates_scr):
    S = out_ref.shape[0]
    Hp = w_hh_ref.shape[0]          # padded hidden size (multiple of 128)

    # ---- fused embedding gather: dynamic leading-axis row loads ----
    # ids live in SMEM; table is VMEM-resident (tiny) with shape (V, 1, D).
    rows = [emb_ref[ids_ref[t]] for t in range(S)]            # each (1, D) f32
    embeds = jnp.concatenate(rows, axis=0)                    # (S, D) f32

    # ---- hoisted input projection: one bf16 MXU matmul for all steps ----
    # Result parked in VMEM scratch so vregs stay free for the serial chain.
    pre_gates_scr[...] = (
        jnp.dot(embeds.astype(jnp.bfloat16), w_ih_ref[...],
                preferred_element_type=jnp.float32)
        + b_ref[...])                                         # (S, 4Hp) f32

    # ---- LSTM recurrence, fully unrolled, h/c held in vregs ----
    h = jnp.zeros((1, Hp), jnp.float32)
    c = jnp.zeros((1, Hp), jnp.float32)
    hs = []
    for t in range(S):  # S is static & small -> full unroll, static slices
        # W_hh is read from the ref at each use (short live range; Mosaic
        # streams tiles to the MXU) instead of being held across the loop.
        gates = pre_gates_scr[t:t + 1, :] + jnp.dot(
            h.astype(jnp.bfloat16), w_hh_ref[...],
            preferred_element_type=jnp.float32)               # (1, 4Hp) f32
        # gate order i, f, g, o; i|f handled by a single sigmoid issue.
        if_g = jax.nn.sigmoid(gates[:, :2 * Hp])
        i_g = if_g[:, :Hp]
        f_g = if_g[:, Hp:]
        g_g = jnp.tanh(gates[:, 2 * Hp:3 * Hp])
        o_g = jax.nn.sigmoid(gates[:, 3 * Hp:])
        c = f_g * c + i_g * g_g
        h = o_g * jnp.tanh(c)
        hs.append(h)                                          # stays in vregs

    # (S, Hp) f32 = one vreg at these sizes; cast once for the bf16 MXU pass.
    lstm_out = jnp.concatenate(hs, axis=0).astype(jnp.bfloat16)

    # ---- tag projection + log-softmax (lane-dense, f32 epilogue) ----
    tag_space = (jnp.dot(lstm_out, w_tag_ref[...],
                         preferred_element_type=jnp.float32)
                 + b_tag_ref[...])                            # (S, Tp) f32
    m = jnp.max(tag_space, axis=1, keepdims=True)
    e = jnp.exp(tag_space - m)
    lse = m + jnp.log(jnp.sum(e, axis=1, keepdims=True))
    out_ref[...] = tag_space - lse


def _round_up(x, m):
    return ((x + m - 1) // m) * m


def _pad_gates_lastdim(w, H, Hp):
    """Pad last dim from 4H to 4Hp, per gate block (gate order i,f,g,o)."""
    lead = w.shape[:-1]
    w4 = w.reshape(lead + (4, H))
    pad = [(0, 0)] * len(lead) + [(0, 0), (0, Hp - H)]
    return jnp.pad(w4, pad).reshape(lead + (4 * Hp,))


def prepare_params(params, lanes=128):
    """One-time padding / dtype prep (hoisted out of the per-call path).

    Exactness of the lane padding:
     * padded gate columns of W_ih/W_hh and padded biases are 0, so padded
       hidden units evolve as c=0, h=0 forever (sigmoid(0)*tanh(0)=0);
     * padded W_tag rows are 0 so those zero h's never leak into tag_space;
     * padded b_tag columns are -1e30 (kept f32) so exp() underflows to 0 and
       the log-softmax denominator only sees the real T classes.
    """
    emb = params["embedding"].astype(jnp.float32)
    w_ih = params["w_ih"].astype(jnp.float32)
    w_hh = params["w_hh"].astype(jnp.float32)
    b = params["b"].astype(jnp.float32)
    w_tag = params["w_tag"].astype(jnp.float32)
    b_tag = params["b_tag"].astype(jnp.float32)

    V, D = emb.shape
    H = w_hh.shape[0]
    T = w_tag.shape[1]
    Hp = _round_up(H, lanes)
    Tp = _round_up(T, lanes)

    # Weights feed the MXU -> bf16 (f32 accumulate in-kernel); biases stay f32.
    w_ih_p = _pad_gates_lastdim(w_ih, H, Hp).astype(jnp.bfloat16)
    w_hh_p = _pad_gates_lastdim(
        jnp.pad(w_hh, ((0, Hp - H), (0, 0))), H, Hp).astype(jnp.bfloat16)
    b_p = _pad_gates_lastdim(b, H, Hp)                                 # f32
    w_tag_p = jnp.pad(w_tag, ((0, Hp - H), (0, Tp - T))).astype(jnp.bfloat16)
    b_tag_p = jnp.pad(b_tag, ((0, 0), (0, Tp - T)),
                      constant_values=-1e30)                            # f32

    return {
        # (V, 1, D): leading-axis dynamic indexing in-kernel (row gather).
        "emb": emb.reshape(V, 1, D),
        "w_ih": w_ih_p, "w_hh": w_hh_p, "b": b_p,
        "w_tag": w_tag_p, "b_tag": b_tag_p,
    }


@functools.partial(jax.jit, static_argnames=("tagset_size",))
def lstm_tagger_forward(sentence, prepped, *, tagset_size):
    """sentence: (S,) int32 token ids.  Returns (S, tagset_size) log-probs."""
    S = sentence.shape[0]
    Hp = prepped["w_hh"].shape[0]
    Tp = prepped["w_tag"].shape[1]

    vmem = pl.BlockSpec(memory_space=pltpu.MemorySpace.VMEM)
    smem = pl.BlockSpec(memory_space=pltpu.MemorySpace.SMEM)

    out = pl.pallas_call(
        _lstm_tagger_kernel,
        out_shape=jax.ShapeDtypeStruct((S, Tp), jnp.float32),
        in_specs=[smem, vmem, vmem, vmem, vmem, vmem, vmem],
        out_specs=vmem,
        scratch_shapes=[
            pltpu.VMEM((S, 4 * Hp), jnp.float32),   # pre_gates staging
        ],
        compiler_params=pltpu.CompilerParams(
            vmem_limit_bytes=32 * 1024 * 1024),
    )(sentence.astype(jnp.int32), prepped["emb"], prepped["w_ih"],
      prepped["w_hh"], prepped["b"], prepped["w_tag"], prepped["b_tag"])
    return out[:, :tagset_size]


def init_params(key, input_dim, hidden_dim, vocab_size, tagset_size):
    ks = jax.random.split(key, 7)
    scale = 0.1
    emb = scale * jax.random.normal(ks[0], (vocab_size, input_dim), jnp.float32)
    # PyTorch stores weight_ih_l0 as (4H, D); we keep the transposed layout.
    w_ih = scale * jax.random.normal(ks[1], (input_dim, 4 * hidden_dim), jnp.float32)
    w_hh = scale * jax.random.normal(ks[2], (hidden_dim, 4 * hidden_dim), jnp.float32)
    b_ih = scale * jax.random.normal(ks[3], (4 * hidden_dim,), jnp.float32)
    b_hh = scale * jax.random.normal(ks[4], (4 * hidden_dim,), jnp.float32)
    w_tag = scale * jax.random.normal(ks[5], (hidden_dim, tagset_size), jnp.float32)
    b_tag = scale * jax.random.normal(ks[6], (tagset_size,), jnp.float32)
    return {
        "embedding": emb,
        "w_ih": w_ih,
        "w_hh": w_hh,
        "b": (b_ih + b_hh).reshape(1, -1),
        "w_tag": w_tag,
        "b_tag": b_tag.reshape(1, -1),
    }


def _reference_forward(sentence, params):
    """Pure-JAX f32 reference matching PyTorch nn.LSTM gate order (i,f,g,o)."""
    emb = params["embedding"][sentence].astype(jnp.float32)
    H = params["w_hh"].shape[0]

    def step(carry, x_t):
        h, c = carry
        gates = x_t @ params["w_ih"] + h @ params["w_hh"] + params["b"][0]
        i = jax.nn.sigmoid(gates[0 * H:1 * H])
        f = jax.nn.sigmoid(gates[1 * H:2 * H])
        g = jnp.tanh(gates[2 * H:3 * H])
        o = jax.nn.sigmoid(gates[3 * H:4 * H])
        c_new = f * c + i * g
        h_new = o * jnp.tanh(c_new)
        return (h_new, c_new), h_new

    h0 = jnp.zeros((H,), jnp.float32)
    (_, _), lstm_out = lax.scan(step, (h0, h0), emb)
    tag_space = lstm_out @ params["w_tag"] + params["b_tag"]
    return jax.nn.log_softmax(tag_space, axis=1)


if __name__ == "__main__":
    # Small, module-consistent sizes.
    input_dim, hidden_dim, vocab_size, tagset_size = 16, 32, 20, 8
    seq_len = 8

    key = jax.random.PRNGKey(0)
    k_params, k_sent = jax.random.split(key)
    params = init_params(k_params, input_dim, hidden_dim, vocab_size, tagset_size)
    prepped = prepare_params(params)           # one-time pad/cast (not per call)
    sentence = jax.random.randint(k_sent, (seq_len,), 0, vocab_size, jnp.int32)

    out = lstm_tagger_forward(sentence, prepped, tagset_size=tagset_size)
    out = jax.block_until_ready(out)

    ref = _reference_forward(sentence, params)
    assert out.shape == (seq_len, tagset_size)
    # bf16 MXU operands (f32 accumulate) vs a pure-f32 reference -> slightly
    # relaxed tolerance; observed error at these sizes is ~1e-3 or less.
    assert jnp.allclose(out, ref, atol=1e-2, rtol=1e-2), "mismatch vs reference"

    print("KERNEL_OK")
</pallas_src>

<mosaic_0001>
module attributes {stable_mosaic.version = 11 : i64} {
  func.func @_lstm_tagger_kernel(%arg0: memref<8xi32, #tpu.memory_space<smem>>, %arg1: memref<20x1x16xf32, #tpu.memory_space<vmem>>, %arg2: memref<16x512xbf16, #tpu.memory_space<vmem>>, %arg3: memref<128x512xbf16, #tpu.memory_space<vmem>>, %arg4: memref<1x512xf32, #tpu.memory_space<vmem>>, %arg5: memref<128x128xbf16, #tpu.memory_space<vmem>>, %arg6: memref<1x128xf32, #tpu.memory_space<vmem>>, %arg7: memref<8x128xf32, #tpu.memory_space<vmem>>, %arg8: memref<8x512xf32, #tpu.memory_space<vmem>>) attributes {dimension_semantics = [], scalar_prefetch = 0 : i64, scratch_operands = 1 : i64, tpu.core_type = #tpu.core_type<tc>} {
    %c0 = arith.constant 0 : index
    %0 = memref.load %arg0[%c0] : memref<8xi32, #tpu.memory_space<smem>>
    %1 = arith.index_cast %0 : i32 to index
    %c0_0 = arith.constant 0 : index
    %c0_1 = arith.constant 0 : index
    %2 = vector.load %arg1[%1, %c0_0, %c0_1] : memref<20x1x16xf32, #tpu.memory_space<vmem>>, vector<1x1x16xf32>
    %3 = vector.shape_cast %2 : vector<1x1x16xf32> to vector<1x16xf32>
    %c1 = arith.constant 1 : index
    %4 = memref.load %arg0[%c1] : memref<8xi32, #tpu.memory_space<smem>>
    %5 = arith.index_cast %4 : i32 to index
    %c0_2 = arith.constant 0 : index
    %c0_3 = arith.constant 0 : index
    %6 = vector.load %arg1[%5, %c0_2, %c0_3] : memref<20x1x16xf32, #tpu.memory_space<vmem>>, vector<1x1x16xf32>
    %7 = vector.shape_cast %6 : vector<1x1x16xf32> to vector<1x16xf32>
    %c2 = arith.constant 2 : index
    %8 = memref.load %arg0[%c2] : memref<8xi32, #tpu.memory_space<smem>>
    %9 = arith.index_cast %8 : i32 to index
    %c0_4 = arith.constant 0 : index
    %c0_5 = arith.constant 0 : index
    %10 = vector.load %arg1[%9, %c0_4, %c0_5] : memref<20x1x16xf32, #tpu.memory_space<vmem>>, vector<1x1x16xf32>
    %11 = vector.shape_cast %10 : vector<1x1x16xf32> to vector<1x16xf32>
    %c3 = arith.constant 3 : index
    %12 = memref.load %arg0[%c3] : memref<8xi32, #tpu.memory_space<smem>>
    %13 = arith.index_cast %12 : i32 to index
    %c0_6 = arith.constant 0 : index
    %c0_7 = arith.constant 0 : index
    %14 = vector.load %arg1[%13, %c0_6, %c0_7] : memref<20x1x16xf32, #tpu.memory_space<vmem>>, vector<1x1x16xf32>
    %15 = vector.shape_cast %14 : vector<1x1x16xf32> to vector<1x16xf32>
    %c4 = arith.constant 4 : index
    %16 = memref.load %arg0[%c4] : memref<8xi32, #tpu.memory_space<smem>>
    %17 = arith.index_cast %16 : i32 to index
    %c0_8 = arith.constant 0 : index
    %c0_9 = arith.constant 0 : index
    %18 = vector.load %arg1[%17, %c0_8, %c0_9] : memref<20x1x16xf32, #tpu.memory_space<vmem>>, vector<1x1x16xf32>
    %19 = vector.shape_cast %18 : vector<1x1x16xf32> to vector<1x16xf32>
    %c5 = arith.constant 5 : index
    %20 = memref.load %arg0[%c5] : memref<8xi32, #tpu.memory_space<smem>>
    %21 = arith.index_cast %20 : i32 to index
    %c0_10 = arith.constant 0 : index
    %c0_11 = arith.constant 0 : index
    %22 = vector.load %arg1[%21, %c0_10, %c0_11] : memref<20x1x16xf32, #tpu.memory_space<vmem>>, vector<1x1x16xf32>
    %23 = vector.shape_cast %22 : vector<1x1x16xf32> to vector<1x16xf32>
    %c6 = arith.constant 6 : index
    %24 = memref.load %arg0[%c6] : memref<8xi32, #tpu.memory_space<smem>>
    %25 = arith.index_cast %24 : i32 to index
    %c0_12 = arith.constant 0 : index
    %c0_13 = arith.constant 0 : index
    %26 = vector.load %arg1[%25, %c0_12, %c0_13] : memref<20x1x16xf32, #tpu.memory_space<vmem>>, vector<1x1x16xf32>
    %27 = vector.shape_cast %26 : vector<1x1x16xf32> to vector<1x16xf32>
    %c7 = arith.constant 7 : index
    %28 = memref.load %arg0[%c7] : memref<8xi32, #tpu.memory_space<smem>>
    %29 = arith.index_cast %28 : i32 to index
    %c0_14 = arith.constant 0 : index
    %c0_15 = arith.constant 0 : index
    %30 = vector.load %arg1[%29, %c0_14, %c0_15] : memref<20x1x16xf32, #tpu.memory_space<vmem>>, vector<1x1x16xf32>
    %31 = vector.shape_cast %30 : vector<1x1x16xf32> to vector<1x16xf32>
    %32 = tpu.concatenate %3, %7, %11, %15, %19, %23, %27, %31 in 0 : vector<1x16xf32>, vector<1x16xf32>, vector<1x16xf32>, vector<1x16xf32>, vector<1x16xf32>, vector<1x16xf32>, vector<1x16xf32>, vector<1x16xf32> -> vector<8x16xf32>
    %33 = arith.truncf %32 : vector<8x16xf32> to vector<8x16xbf16>
    %c0_16 = arith.constant 0 : index
    %c0_17 = arith.constant 0 : index
    %34 = vector.load %arg2[%c0_16, %c0_17] : memref<16x512xbf16, #tpu.memory_space<vmem>>, vector<16x512xbf16>
    %cst = arith.constant dense<0.000000e+00> : vector<8x512xf32>
    %35 = tpu.matmul %33, %34, %cst {dimension_numbers = #tpu.dot_dimension_numbers<[1], [0], [0], [1], [0, 0, 1, 1], [], []>} : vector<8x16xbf16>, vector<16x512xbf16>, vector<8x512xf32> -> vector<8x512xf32>
    %c0_18 = arith.constant 0 : index
    %c0_19 = arith.constant 0 : index
    %36 = vector.load %arg4[%c0_18, %c0_19] : memref<1x512xf32, #tpu.memory_space<vmem>>, vector<1x512xf32>
    %37 = vector.broadcast %36 : vector<1x512xf32> to vector<8x512xf32>
    %38 = arith.addf %35, %37 : vector<8x512xf32>
    %c0_20 = arith.constant 0 : index
    %c0_21 = arith.constant 0 : index
    %39 = vector.load %arg8[%c0_20, %c0_21] : memref<8x512xf32, #tpu.memory_space<vmem>>, vector<8x512xf32>
    tpu.vector_store %arg8[%c0_20, %c0_21], %38 {strides = array<i32>} : memref<8x512xf32, #tpu.memory_space<vmem>>, vector<8x512xf32>,
    %cst_22 = arith.constant 0.000000e+00 : f32
    %40 = vector.broadcast %cst_22 : f32 to vector<1x128xf32>
    %cst_23 = arith.constant 0.000000e+00 : f32
    %41 = vector.broadcast %cst_23 : f32 to vector<1x128xf32>
    %c0_24 = arith.constant 0 : index
    %c0_25 = arith.constant 0 : index
    %42 = vector.load %arg8[%c0_24, %c0_25] : memref<8x512xf32, #tpu.memory_space<vmem>>, vector<1x512xf32>
    %43 = arith.truncf %40 : vector<1x128xf32> to vector<1x128xbf16>
    %c0_26 = arith.constant 0 : index
    %c0_27 = arith.constant 0 : index
    %44 = vector.load %arg3[%c0_26, %c0_27] : memref<128x512xbf16, #tpu.memory_space<vmem>>, vector<128x512xbf16>
    %cst_28 = arith.constant dense<0.000000e+00> : vector<1x512xf32>
    %45 = tpu.matmul %43, %44, %cst_28 {dimension_numbers = #tpu.dot_dimension_numbers<[1], [0], [0], [1], [0, 0, 1, 1], [], []>} : vector<1x128xbf16>, vector<128x512xbf16>, vector<1x512xf32> -> vector<1x512xf32>
    %46 = arith.addf %42, %45 : vector<1x512xf32>
    %47 = vector.extract_strided_slice %46 {offsets = [0, 0], sizes = [1, 256], strides = [1, 1]} : vector<1x512xf32> to vector<1x256xf32>
    %48 = arith.negf %47 : vector<1x256xf32>
    %49 = math.exp %48 : vector<1x256xf32>
    %cst_29 = arith.constant 1.000000e+00 : f32
    %50 = vector.broadcast %cst_29 : f32 to vector<1x256xf32>
    %51 = arith.addf %50, %49 : vector<1x256xf32>
    %52 = arith.divf %50, %51 : vector<1x256xf32>
    %53 = vector.extract_strided_slice %52 {offsets = [0, 0], sizes = [1, 128], strides = [1, 1]} : vector<1x256xf32> to vector<1x128xf32>
    %54 = vector.extract_strided_slice %52 {offsets = [0, 128], sizes = [1, 128], strides = [1, 1]} : vector<1x256xf32> to vector<1x128xf32>
    %55 = vector.extract_strided_slice %46 {offsets = [0, 256], sizes = [1, 128], strides = [1, 1]} : vector<1x512xf32> to vector<1x128xf32>
    %56 = math.tanh %55 : vector<1x128xf32>
    %57 = vector.extract_strided_slice %46 {offsets = [0, 384], sizes = [1, 128], strides = [1, 1]} : vector<1x512xf32> to vector<1x128xf32>
    %58 = arith.negf %57 : vector<1x128xf32>
    %59 = math.exp %58 : vector<1x128xf32>
    %cst_30 = arith.constant 1.000000e+00 : f32
    %60 = vector.broadcast %cst_30 : f32 to vector<1x128xf32>
    %61 = arith.addf %60, %59 : vector<1x128xf32>
    %62 = arith.divf %60, %61 : vector<1x128xf32>
    %63 = arith.mulf %54, %41 : vector<1x128xf32>
    %64 = arith.mulf %53, %56 : vector<1x128xf32>
    %65 = arith.addf %63, %64 : vector<1x128xf32>
    %66 = math.tanh %65 : vector<1x128xf32>
    %67 = arith.mulf %62, %66 : vector<1x128xf32>
    %c1_31 = arith.constant 1 : index
    %c0_32 = arith.constant 0 : index
    %68 = vector.load %arg8[%c1_31, %c0_32] : memref<8x512xf32, #tpu.memory_space<vmem>>, vector<1x512xf32>
    %69 = arith.truncf %67 : vector<1x128xf32> to vector<1x128xbf16>
    %c0_33 = arith.constant 0 : index
    %c0_34 = arith.constant 0 : index
    %70 = vector.load %arg3[%c0_33, %c0_34] : memref<128x512xbf16, #tpu.memory_space<vmem>>, vector<128x512xbf16>
    %cst_35 = arith.constant dense<0.000000e+00> : vector<1x512xf32>
    %71 = tpu.matmul %69, %70, %cst_35 {dimension_numbers = #tpu.dot_dimension_numbers<[1], [0], [0], [1], [0, 0, 1, 1], [], []>} : vector<1x128xbf16>, vector<128x512xbf16>, vector<1x512xf32> -> vector<1x512xf32>
    %72 = arith.addf %68, %71 : vector<1x512xf32>
    %73 = vector.extract_strided_slice %72 {offsets = [0, 0], sizes = [1, 256], strides = [1, 1]} : vector<1x512xf32> to vector<1x256xf32>
    %74 = arith.negf %73 : vector<1x256xf32>
    %75 = math.exp %74 : vector<1x256xf32>
    %cst_36 = arith.constant 1.000000e+00 : f32
    %76 = vector.broadcast %cst_36 : f32 to vector<1x256xf32>
    %77 = arith.addf %76, %75 : vector<1x256xf32>
    %78 = arith.divf %76, %77 : vector<1x256xf32>
    %79 = vector.extract_strided_slice %78 {offsets = [0, 0], sizes = [1, 128], strides = [1, 1]} : vector<1x256xf32> to vector<1x128xf32>
    %80 = vector.extract_strided_slice %78 {offsets = [0, 128], sizes = [1, 128], strides = [1, 1]} : vector<1x256xf32> to vector<1x128xf32>
    %81 = vector.extract_strided_slice %72 {offsets = [0, 256], sizes = [1, 128], strides = [1, 1]} : vector<1x512xf32> to vector<1x128xf32>
    %82 = math.tanh %81 : vector<1x128xf32>
    %83 = vector.extract_strided_slice %72 {offsets = [0, 384], sizes = [1, 128], strides = [1, 1]} : vector<1x512xf32> to vector<1x128xf32>
    %84 = arith.negf %83 : vector<1x128xf32>
    %85 = math.exp %84 : vector<1x128xf32>
    %cst_37 = arith.constant 1.000000e+00 : f32
    %86 = vector.broadcast %cst_37 : f32 to vector<1x128xf32>
    %87 = arith.addf %86, %85 : vector<1x128xf32>
    %88 = arith.divf %86, %87 : vector<1x128xf32>
    %89 = arith.mulf %80, %65 : vector<1x128xf32>
    %90 = arith.mulf %79, %82 : vector<1x128xf32>
    %91 = arith.addf %89, %90 : vector<1x128xf32>
    %92 = math.tanh %91 : vector<1x128xf32>
    %93 = arith.mulf %88, %92 : vector<1x128xf32>
    %c2_38 = arith.constant 2 : index
    %c0_39 = arith.constant 0 : index
    %94 = vector.load %arg8[%c2_38, %c0_39] : memref<8x512xf32, #tpu.memory_space<vmem>>, vector<1x512xf32>
    %95 = arith.truncf %93 : vector<1x128xf32> to vector<1x128xbf16>
    %c0_40 = arith.constant 0 : index
    %c0_41 = arith.constant 0 : index
    %96 = vector.load %arg3[%c0_40, %c0_41] : memref<128x512xbf16, #tpu.memory_space<vmem>>, vector<128x512xbf16>
    %cst_42 = arith.constant dense<0.000000e+00> : vector<1x512xf32>
    %97 = tpu.matmul %95, %96, %cst_42 {dimension_numbers = #tpu.dot_dimension_numbers<[1], [0], [0], [1], [0, 0, 1, 1], [], []>} : vector<1x128xbf16>, vector<128x512xbf16>, vector<1x512xf32> -> vector<1x512xf32>
    %98 = arith.addf %94, %97 : vector<1x512xf32>
    %99 = vector.extract_strided_slice %98 {offsets = [0, 0], sizes = [1, 256], strides = [1, 1]} : vector<1x512xf32> to vector<1x256xf32>
    %100 = arith.negf %99 : vector<1x256xf32>
    %101 = math.exp %100 : vector<1x256xf32>
    %cst_43 = arith.constant 1.000000e+00 : f32
    %102 = vector.broadcast %cst_43 : f32 to vector<1x256xf32>
    %103 = arith.addf %102, %101 : vector<1x256xf32>
    %104 = arith.divf %102, %103 : vector<1x256xf32>
    %105 = vector.extract_strided_slice %104 {offsets = [0, 0], sizes = [1, 128], strides = [1, 1]} : vector<1x256xf32> to vector<1x128xf32>
    %106 = vector.extract_strided_slice %104 {offsets = [0, 128], sizes = [1, 128], strides = [1, 1]} : vector<1x256xf32> to vector<1x128xf32>
    %107 = vector.extract_strided_slice %98 {offsets = [0, 256], sizes = [1, 128], strides = [1, 1]} : vector<1x512xf32> to vector<1x128xf32>
    %108 = math.tanh %107 : vector<1x128xf32>
    %109 = vector.extract_strided_slice %98 {offsets = [0, 384], sizes = [1, 128], strides = [1, 1]} : vector<1x512xf32> to vector<1x128xf32>
    %110 = arith.negf %109 : vector<1x128xf32>
    %111 = math.exp %110 : vector<1x128xf32>
    %cst_44 = arith.constant 1.000000e+00 : f32
    %112 = vector.broadcast %cst_44 : f32 to vector<1x128xf32>
    %113 = arith.addf %112, %111 : vector<1x128xf32>
    %114 = arith.divf %112, %113 : vector<1x128xf32>
    %115 = arith.mulf %106, %91 : vector<1x128xf32>
    %116 = arith.mulf %105, %108 : vector<1x128xf32>
    %117 = arith.addf %115, %116 : vector<1x128xf32>
    %118 = math.tanh %117 : vector<1x128xf32>
    %119 = arith.mulf %114, %118 : vector<1x128xf32>
    %c3_45 = arith.constant 3 : index
    %c0_46 = arith.constant 0 : index
    %120 = vector.load %arg8[%c3_45, %c0_46] : memref<8x512xf32, #tpu.memory_space<vmem>>, vector<1x512xf32>
    %121 = arith.truncf %119 : vector<1x128xf32> to vector<1x128xbf16>
    %c0_47 = arith.constant 0 : index
    %c0_48 = arith.constant 0 : index
    %122 = vector.load %arg3[%c0_47, %c0_48] : memref<128x512xbf16, #tpu.memory_space<vmem>>, vector<128x512xbf16>
    %cst_49 = arith.constant dense<0.000000e+00> : vector<1x512xf32>
    %123 = tpu.matmul %121, %122, %cst_49 {dimension_numbers = #tpu.dot_dimension_numbers<[1], [0], [0], [1], [0, 0, 1, 1], [], []>} : vector<1x128xbf16>, vector<128x512xbf16>, vector<1x512xf32> -> vector<1x512xf32>
    %124 = arith.addf %120, %123 : vector<1x512xf32>
    %125 = vector.extract_strided_slice %124 {offsets = [0, 0], sizes = [1, 256], strides = [1, 1]} : vector<1x512xf32> to vector<1x256xf32>
    %126 = arith.negf %125 : vector<1x256xf32>
    %127 = math.exp %126 : vector<1x256xf32>
    %cst_50 = arith.constant 1.000000e+00 : f32
    %128 = vector.broadcast %cst_50 : f32 to vector<1x256xf32>
    %129 = arith.addf %128, %127 : vector<1x256xf32>
    %130 = arith.divf %128, %129 : vector<1x256xf32>
    %131 = vector.extract_strided_slice %130 {offsets = [0, 0], sizes = [1, 128], strides = [1, 1]} : vector<1x256xf32> to vector<1x128xf32>
    %132 = vector.extract_strided_slice %130 {offsets = [0, 128], sizes = [1, 128], strides = [1, 1]} : vector<1x256xf32> to vector<1x128xf32>
    %133 = vector.extract_strided_slice %124 {offsets = [0, 256], sizes = [1, 128], strides = [1, 1]} : vector<1x512xf32> to vector<1x128xf32>
    %134 = math.tanh %133 : vector<1x128xf32>
    %135 = vector.extract_strided_slice %124 {offsets = [0, 384], sizes = [1, 128], strides = [1, 1]} : vector<1x512xf32> to vector<1x128xf32>
    %136 = arith.negf %135 : vector<1x128xf32>
    %137 = math.exp %136 : vector<1x128xf32>
    %cst_51 = arith.constant 1.000000e+00 : f32
    %138 = vector.broadcast %cst_51 : f32 to vector<1x128xf32>
    %139 = arith.addf %138, %137 : vector<1x128xf32>
    %140 = arith.divf %138, %139 : vector<1x128xf32>
    %141 = arith.mulf %132, %117 : vector<1x128xf32>
    %142 = arith.mulf %131, %134 : vector<1x128xf32>
    %143 = arith.addf %141, %142 : vector<1x128xf32>
    %144 = math.tanh %143 : vector<1x128xf32>
    %145 = arith.mulf %140, %144 : vector<1x128xf32>
    %c4_52 = arith.constant 4 : index
    %c0_53 = arith.constant 0 : index
    %146 = vector.load %arg8[%c4_52, %c0_53] : memref<8x512xf32, #tpu.memory_space<vmem>>, vector<1x512xf32>
    %147 = arith.truncf %145 : vector<1x128xf32> to vector<1x128xbf16>
    %c0_54 = arith.constant 0 : index
    %c0_55 = arith.constant 0 : index
    %148 = vector.load %arg3[%c0_54, %c0_55] : memref<128x512xbf16, #tpu.memory_space<vmem>>, vector<128x512xbf16>
    %cst_56 = arith.constant dense<0.000000e+00> : vector<1x512xf32>
    %149 = tpu.matmul %147, %148, %cst_56 {dimension_numbers = #tpu.dot_dimension_numbers<[1], [0], [0], [1], [0, 0, 1, 1], [], []>} : vector<1x128xbf16>, vector<128x512xbf16>, vector<1x512xf32> -> vector<1x512xf32>
    %150 = arith.addf %146, %149 : vector<1x512xf32>
    %151 = vector.extract_strided_slice %150 {offsets = [0, 0], sizes = [1, 256], strides = [1, 1]} : vector<1x512xf32> to vector<1x256xf32>
    %152 = arith.negf %151 : vector<1x256xf32>
    %153 = math.exp %152 : vector<1x256xf32>
    %cst_57 = arith.constant 1.000000e+00 : f32
    %154 = vector.broadcast %cst_57 : f32 to vector<1x256xf32>
    %155 = arith.addf %154, %153 : vector<1x256xf32>
    %156 = arith.divf %154, %155 : vector<1x256xf32>
    %157 = vector.extract_strided_slice %156 {offsets = [0, 0], sizes = [1, 128], strides = [1, 1]} : vector<1x256xf32> to vector<1x128xf32>
    %158 = vector.extract_strided_slice %156 {offsets = [0, 128], sizes = [1, 128], strides = [1, 1]} : vector<1x256xf32> to vector<1x128xf32>
    %159 = vector.extract_strided_slice %150 {offsets = [0, 256], sizes = [1, 128], strides = [1, 1]} : vector<1x512xf32> to vector<1x128xf32>
    %160 = math.tanh %159 : vector<1x128xf32>
    %161 = vector.extract_strided_slice %150 {offsets = [0, 384], sizes = [1, 128], strides = [1, 1]} : vector<1x512xf32> to vector<1x128xf32>
    %162 = arith.negf %161 : vector<1x128xf32>
    %163 = math.exp %162 : vector<1x128xf32>
    %cst_58 = arith.constant 1.000000e+00 : f32
    %164 = vector.broadcast %cst_58 : f32 to vector<1x128xf32>
    %165 = arith.addf %164, %163 : vector<1x128xf32>
    %166 = arith.divf %164, %165 : vector<1x128xf32>
    %167 = arith.mulf %158, %143 : vector<1x128xf32>
    %168 = arith.mulf %157, %160 : vector<1x128xf32>
    %169 = arith.addf %167, %168 : vector<1x128xf32>
    %170 = math.tanh %169 : vector<1x128xf32>
    %171 = arith.mulf %166, %170 : vector<1x128xf32>
    %c5_59 = arith.constant 5 : index
    %c0_60 = arith.constant 0 : index
    %172 = vector.load %arg8[%c5_59, %c0_60] : memref<8x512xf32, #tpu.memory_space<vmem>>, vector<1x512xf32>
    %173 = arith.truncf %171 : vector<1x128xf32> to vector<1x128xbf16>
    %c0_61 = arith.constant 0 : index
    %c0_62 = arith.constant 0 : index
    %174 = vector.load %arg3[%c0_61, %c0_62] : memref<128x512xbf16, #tpu.memory_space<vmem>>, vector<128x512xbf16>
    %cst_63 = arith.constant dense<0.000000e+00> : vector<1x512xf32>
    %175 = tpu.matmul %173, %174, %cst_63 {dimension_numbers = #tpu.dot_dimension_numbers<[1], [0], [0], [1], [0, 0, 1, 1], [], []>} : vector<1x128xbf16>, vector<128x512xbf16>, vector<1x512xf32> -> vector<1x512xf32>
    %176 = arith.addf %172, %175 : vector<1x512xf32>
    %177 = vector.extract_strided_slice %176 {offsets = [0, 0], sizes = [1, 256], strides = [1, 1]} : vector<1x512xf32> to vector<1x256xf32>
    %178 = arith.negf %177 : vector<1x256xf32>
    %179 = math.exp %178 : vector<1x256xf32>
    %cst_64 = arith.constant 1.000000e+00 : f32
    %180 = vector.broadcast %cst_64 : f32 to vector<1x256xf32>
    %181 = arith.addf %180, %179 : vector<1x256xf32>
    %182 = arith.divf %180, %181 : vector<1x256xf32>
    %183 = vector.extract_strided_slice %182 {offsets = [0, 0], sizes = [1, 128], strides = [1, 1]} : vector<1x256xf32> to vector<1x128xf32>
    %184 = vector.extract_strided_slice %182 {offsets = [0, 128], sizes = [1, 128], strides = [1, 1]} : vector<1x256xf32> to vector<1x128xf32>
    %185 = vector.extract_strided_slice %176 {offsets = [0, 256], sizes = [1, 128], strides = [1, 1]} : vector<1x512xf32> to vector<1x128xf32>
    %186 = math.tanh %185 : vector<1x128xf32>
    %187 = vector.extract_strided_slice %176 {offsets = [0, 384], sizes = [1, 128], strides = [1, 1]} : vector<1x512xf32> to vector<1x128xf32>
    %188 = arith.negf %187 : vector<1x128xf32>
    %189 = math.exp %188 : vector<1x128xf32>
    %cst_65 = arith.constant 1.000000e+00 : f32
    %190 = vector.broadcast %cst_65 : f32 to vector<1x128xf32>
    %191 = arith.addf %190, %189 : vector<1x128xf32>
    %192 = arith.divf %190, %191 : vector<1x128xf32>
    %193 = arith.mulf %184, %169 : vector<1x128xf32>
    %194 = arith.mulf %183, %186 : vector<1x128xf32>
    %195 = arith.addf %193, %194 : vector<1x128xf32>
    %196 = math.tanh %195 : vector<1x128xf32>
    %197 = arith.mulf %192, %196 : vector<1x128xf32>
    %c6_66 = arith.constant 6 : index
    %c0_67 = arith.constant 0 : index
    %198 = vector.load %arg8[%c6_66, %c0_67] : memref<8x512xf32, #tpu.memory_space<vmem>>, vector<1x512xf32>
    %199 = arith.truncf %197 : vector<1x128xf32> to vector<1x128xbf16>
    %c0_68 = arith.constant 0 : index
    %c0_69 = arith.constant 0 : index
    %200 = vector.load %arg3[%c0_68, %c0_69] : memref<128x512xbf16, #tpu.memory_space<vmem>>, vector<128x512xbf16>
    %cst_70 = arith.constant dense<0.000000e+00> : vector<1x512xf32>
    %201 = tpu.matmul %199, %200, %cst_70 {dimension_numbers = #tpu.dot_dimension_numbers<[1], [0], [0], [1], [0, 0, 1, 1], [], []>} : vector<1x128xbf16>, vector<128x512xbf16>, vector<1x512xf32> -> vector<1x512xf32>
    %202 = arith.addf %198, %201 : vector<1x512xf32>
    %203 = vector.extract_strided_slice %202 {offsets = [0, 0], sizes = [1, 256], strides = [1, 1]} : vector<1x512xf32> to vector<1x256xf32>
    %204 = arith.negf %203 : vector<1x256xf32>
    %205 = math.exp %204 : vector<1x256xf32>
    %cst_71 = arith.constant 1.000000e+00 : f32
    %206 = vector.broadcast %cst_71 : f32 to vector<1x256xf32>
    %207 = arith.addf %206, %205 : vector<1x256xf32>
    %208 = arith.divf %206, %207 : vector<1x256xf32>
    %209 = vector.extract_strided_slice %208 {offsets = [0, 0], sizes = [1, 128], strides = [1, 1]} : vector<1x256xf32> to vector<1x128xf32>
    %210 = vector.extract_strided_slice %208 {offsets = [0, 128], sizes = [1, 128], strides = [1, 1]} : vector<1x256xf32> to vector<1x128xf32>
    %211 = vector.extract_strided_slice %202 {offsets = [0, 256], sizes = [1, 128], strides = [1, 1]} : vector<1x512xf32> to vector<1x128xf32>
    %212 = math.tanh %211 : vector<1x128xf32>
    %213 = vector.extract_strided_slice %202 {offsets = [0, 384], sizes = [1, 128], strides = [1, 1]} : vector<1x512xf32> to vector<1x128xf32>
    %214 = arith.negf %213 : vector<1x128xf32>
    %215 = math.exp %214 : vector<1x128xf32>
    %cst_72 = arith.constant 1.000000e+00 : f32
    %216 = vector.broadcast %cst_72 : f32 to vector<1x128xf32>
    %217 = arith.addf %216, %215 : vector<1x128xf32>
    %218 = arith.divf %216, %217 : vector<1x128xf32>
    %219 = arith.mulf %210, %195 : vector<1x128xf32>
    %220 = arith.mulf %209, %212 : vector<1x128xf32>
    %221 = arith.addf %219, %220 : vector<1x128xf32>
    %222 = math.tanh %221 : vector<1x128xf32>
    %223 = arith.mulf %218, %222 : vector<1x128xf32>
    %c7_73 = arith.constant 7 : index
    %c0_74 = arith.constant 0 : index
    %224 = vector.load %arg8[%c7_73, %c0_74] : memref<8x512xf32, #tpu.memory_space<vmem>>, vector<1x512xf32>
    %225 = arith.truncf %223 : vector<1x128xf32> to vector<1x128xbf16>
    %c0_75 = arith.constant 0 : index
    %c0_76 = arith.constant 0 : index
    %226 = vector.load %arg3[%c0_75, %c0_76] : memref<128x512xbf16, #tpu.memory_space<vmem>>, vector<128x512xbf16>
    %cst_77 = arith.constant dense<0.000000e+00> : vector<1x512xf32>
    %227 = tpu.matmul %225, %226, %cst_77 {dimension_numbers = #tpu.dot_dimension_numbers<[1], [0], [0], [1], [0, 0, 1, 1], [], []>} : vector<1x128xbf16>, vector<128x512xbf16>, vector<1x512xf32> -> vector<1x512xf32>
    %228 = arith.addf %224, %227 : vector<1x512xf32>
    %229 = vector.extract_strided_slice %228 {offsets = [0, 0], sizes = [1, 256], strides = [1, 1]} : vector<1x512xf32> to vector<1x256xf32>
    %230 = arith.negf %229 : vector<1x256xf32>
    %231 = math.exp %230 : vector<1x256xf32>
    %cst_78 = arith.constant 1.000000e+00 : f32
    %232 = vector.broadcast %cst_78 : f32 to vector<1x256xf32>
    %233 = arith.addf %232, %231 : vector<1x256xf32>
    %234 = arith.divf %232, %233 : vector<1x256xf32>
    %235 = vector.extract_strided_slice %234 {offsets = [0, 0], sizes = [1, 128], strides = [1, 1]} : vector<1x256xf32> to vector<1x128xf32>
    %236 = vector.extract_strided_slice %234 {offsets = [0, 128], sizes = [1, 128], strides = [1, 1]} : vector<1x256xf32> to vector<1x128xf32>
    %237 = vector.extract_strided_slice %228 {offsets = [0, 256], sizes = [1, 128], strides = [1, 1]} : vector<1x512xf32> to vector<1x128xf32>
    %238 = math.tanh %237 : vector<1x128xf32>
    %239 = vector.extract_strided_slice %228 {offsets = [0, 384], sizes = [1, 128], strides = [1, 1]} : vector<1x512xf32> to vector<1x128xf32>
    %240 = arith.negf %239 : vector<1x128xf32>
    %241 = math.exp %240 : vector<1x128xf32>
    %cst_79 = arith.constant 1.000000e+00 : f32
    %242 = vector.broadcast %cst_79 : f32 to vector<1x128xf32>
    %243 = arith.addf %242, %241 : vector<1x128xf32>
    %244 = arith.divf %242, %243 : vector<1x128xf32>
    %245 = arith.mulf %236, %221 : vector<1x128xf32>
    %246 = arith.mulf %235, %238 : vector<1x128xf32>
    %247 = arith.addf %245, %246 : vector<1x128xf32>
    %248 = math.tanh %247 : vector<1x128xf32>
    %249 = arith.mulf %244, %248 : vector<1x128xf32>
    %250 = tpu.concatenate %67, %93, %119, %145, %171, %197, %223, %249 in 0 : vector<1x128xf32>, vector<1x128xf32>, vector<1x128xf32>, vector<1x128xf32>, vector<1x128xf32>, vector<1x128xf32>, vector<1x128xf32>, vector<1x128xf32> -> vector<8x128xf32>
    %251 = arith.truncf %250 : vector<8x128xf32> to vector<8x128xbf16>
    %c0_80 = arith.constant 0 : index
    %c0_81 = arith.constant 0 : index
    %252 = vector.load %arg5[%c0_80, %c0_81] : memref<128x128xbf16, #tpu.memory_space<vmem>>, vector<128x128xbf16>
    %cst_82 = arith.constant dense<0.000000e+00> : vector<8x128xf32>
    %253 = tpu.matmul %251, %252, %cst_82 {dimension_numbers = #tpu.dot_dimension_numbers<[1], [0], [0], [1], [0, 0, 1, 1], [], []>} : vector<8x128xbf16>, vector<128x128xbf16>, vector<8x128xf32> -> vector<8x128xf32>
    %c0_83 = arith.constant 0 : index
    %c0_84 = arith.constant 0 : index
    %254 = vector.load %arg6[%c0_83, %c0_84] : memref<1x128xf32, #tpu.memory_space<vmem>>, vector<1x128xf32>
    %255 = vector.broadcast %254 : vector<1x128xf32> to vector<8x128xf32>
    %256 = arith.addf %253, %255 : vector<8x128xf32>
    %cst_85 = arith.constant dense<0xFF800000> : vector<8xf32>
    %257 = vector.multi_reduction <maximumf>, %256, %cst_85 [1] : vector<8x128xf32> to vector<8xf32>
    %258 = vector.shape_cast %257 : vector<8xf32> to vector<8x1xf32>
    %259 = vector.broadcast %258 : vector<8x1xf32> to vector<8x128xf32>
    %260 = arith.subf %256, %259 : vector<8x128xf32>
    %261 = math.exp %260 : vector<8x128xf32>
    %cst_86 = arith.constant dense<0.000000e+00> : vector<8xf32>
    %262 = vector.multi_reduction <add>, %261, %cst_86 [1] : vector<8x128xf32> to vector<8xf32>
    %263 = vector.shape_cast %262 : vector<8xf32> to vector<8x1xf32>
    %264 = math.log %263 : vector<8x1xf32>
    %265 = arith.addf %258, %264 : vector<8x1xf32>
    %266 = vector.broadcast %265 : vector<8x1xf32> to vector<8x128xf32>
    %267 = arith.subf %256, %266 : vector<8x128xf32>
    %c0_87 = arith.constant 0 : index
    %c0_88 = arith.constant 0 : index
    %268 = vector.load %arg7[%c0_87, %c0_88] : memref<8x128xf32, #tpu.memory_space<vmem>>, vector<8x128xf32>
    tpu.vector_store %arg7[%c0_87, %c0_88], %267 {strides = array<i32>} : memref<8x128xf32, #tpu.memory_space<vmem>>, vector<8x128xf32>,
    return
  }
}

</mosaic_0001>

<llo_original>
// kernel: lstm_tagger_forward.1
$region0: #{lstm_tagger_forward.1}
  #allocation0 [shape = 'u32[]', space=smem, size = 0x4, offset = 0x4, fixed_abs, tag = 'smem constant byte address 0x4 - core index']
  #allocation1 [shape = 'u32[144,128]{1,0:T(1,128)}', space=vmem, size = 0x12000, scoped, tag = 'internal scratch']
  #allocation2 [shape = 'f32[8,512]{1,0:T(8,128)}', space=vmem, size = 0x4000, scoped, tag = 'scratch operand']
  %s0 = inlined_call_operand.vmem [shape: s32[8], index: 0, kind: input, shape index: {}]
  %s1 = inlined_call_operand.vmem [shape: f32[20,1,16], index: 1, kind: input, shape index: {}]
  %s2 = inlined_call_operand.vmem [shape: bf16[16,512], index: 2, kind: input, shape index: {}]
  %s3 = inlined_call_operand.hbm [shape: bf16[128,512], index: 3, kind: input, shape index: {}]
  %s4 = inlined_call_operand.vmem [shape: f32[1,512], index: 4, kind: input, shape index: {}]
  %s5 = inlined_call_operand.hbm [shape: bf16[128,128], index: 5, kind: input, shape index: {}]
  %s6 = inlined_call_operand.vmem [shape: f32[1,128], index: 6, kind: input, shape index: {}]
  %s7 = inlined_call_operand.hbm [shape: f32[8,128], index: 7, kind: output, shape index: {}]
  %s8 = sld [smem:[#allocation0]]
  $region50: #{lstm_tagger_forward.1} parent=0
    _
  %s10 = ssub.s32 1, %s8
  %s11 = scalar_select 0, %s10, %s8
  $region1: #{lstm_tagger_forward.1} parent=0
    #allocation3 [shape = 'u8[512]{0}', space=smem, size = 0x200, scoped, tag = 'input window, operand 0, single buffered']
    #allocation4 [shape = 's32[1]{0}', space=sflag, size = 0x4, scoped, tag = 'scoped memory for lstm_tagger_forward.1']
    #allocation5 [shape = 's32[1]{0}', space=sflag, size = 0x4, scoped, tag = 'scoped memory for lstm_tagger_forward.1']
    #allocation6 [shape = 's32[1]{0}', space=sflag, size = 0x4, scoped, tag = 'scoped memory for lstm_tagger_forward.1']
    #allocation7 [shape = 'u8[131072]{0}', space=vmem, size = 0x20000, scoped, tag = 'input window, operand 3, single buffered']
    #allocation8 [shape = 'u8[32768]{0}', space=vmem, size = 0x8000, scoped, tag = 'input window, operand 5, single buffered']
    #allocation9 [shape = 's32[1]{0}', space=sflag, size = 0x4, scoped, tag = 'scoped memory for lstm_tagger_forward.1']
    #allocation10 [shape = 'u8[4096]{0}', space=vmem, size = 0x1000, scoped, tag = 'output window, operand 0, single buffered']
    %12 = vsyncpa [#allocation6], 0
    %13 = vsyncpa [#allocation4], 0
    %14 = vsyncpa [#allocation9], 0
    %15 = vsyncpa [#allocation5], 0
    // Predicated region
    $region2: #{lstm_tagger_forward.1} parent=1 // pred_check
      _
    $region3: #{lstm_tagger_forward.1} parent=1 // pred_check_branch
      %17 = sbr.rel (0) target = $region5
    $region4: #{lstm_tagger_forward.1} parent=1 // pred_region
      %s19 = ssub.s32 16, 16
      %20 = vsyncadd [#allocation6], %s19
      %s22 = sshll.u32 %s0, 4
      %s23 = int_to_ptr.vmem [resolvable:$true] %s22
      %25 = dma.vmem_to_smem %s23, 16, [#allocation3], [#allocation6]
    $region5: #{lstm_tagger_forward.1} parent=1 // pred_fallthru
      _
    // Predicated region
    $region6: #{lstm_tagger_forward.1} parent=1 // pred_check
      _
    $region7: #{lstm_tagger_forward.1} parent=1 // pred_check_branch
      %27 = sbr.rel (0) target = $region9
    $region8: #{lstm_tagger_forward.1} parent=1 // pred_region
      _
    $region9: #{lstm_tagger_forward.1} parent=1 // pred_fallthru
      _
    // Predicated region
    $region10: #{lstm_tagger_forward.1} parent=1 // pred_check
      _
    $region11: #{lstm_tagger_forward.1} parent=1 // pred_check_branch
      %29 = sbr.rel (0) target = $region13
    $region12: #{lstm_tagger_forward.1} parent=1 // pred_region
      _
    $region13: #{lstm_tagger_forward.1} parent=1 // pred_fallthru
      _
    // Predicated region
    $region14: #{lstm_tagger_forward.1} parent=1 // pred_check
      _
    $region15: #{lstm_tagger_forward.1} parent=1 // pred_check_branch
      %31 = sbr.rel (0) target = $region17
    $region16: #{lstm_tagger_forward.1} parent=1 // pred_region
      %s33 = ssub.s32 4096, 4096
      %34 = vsyncadd [#allocation4], %s33
      %s35 = sshll.u32 [#allocation7], 4
      %s36 = int_to_ptr.vmem [resolvable:$true] %s35
      %41 = dma.hbm_to_vmem [thread:$0]  %s3, 4096, %s36, [#allocation4], 256, 256, 16
    $region17: #{lstm_tagger_forward.1} parent=1 // pred_fallthru
      _
    // Predicated region
    $region18: #{lstm_tagger_forward.1} parent=1 // pred_check
      _
    $region19: #{lstm_tagger_forward.1} parent=1 // pred_check_branch
      %43 = sbr.rel (0) target = $region21
    $region20: #{lstm_tagger_forward.1} parent=1 // pred_region
      _
    $region21: #{lstm_tagger_forward.1} parent=1 // pred_fallthru
      _
    // Predicated region
    $region22: #{lstm_tagger_forward.1} parent=1 // pred_check
      _
    $region23: #{lstm_tagger_forward.1} parent=1 // pred_check_branch
      %45 = sbr.rel (0) target = $region25
    $region24: #{lstm_tagger_forward.1} parent=1 // pred_region
      %s47 = ssub.s32 1024, 1024
      %48 = vsyncadd [#allocation9], %s47
      %s49 = sshll.u32 [#allocation8], 4
      %s50 = int_to_ptr.vmem [resolvable:$true] %s49
      %55 = dma.hbm_to_vmem [thread:$0]  %s5, 1024, %s50, [#allocation9], 64, 64, 4
    $region25: #{lstm_tagger_forward.1} parent=1 // pred_fallthru
      _
    // Predicated region
    $region26: #{lstm_tagger_forward.1} parent=1 // pred_check
      _
    $region27: #{lstm_tagger_forward.1} parent=1 // pred_check_branch
      %57 = sbr.rel (0) target = $region29
    $region28: #{lstm_tagger_forward.1} parent=1 // pred_region
      _
    $region29: #{lstm_tagger_forward.1} parent=1 // pred_fallthru
      _
    // Predicated region
    $region30: #{lstm_tagger_forward.1} parent=1 // pred_check
      _
    $region31: #{lstm_tagger_forward.1} parent=1 // pred_check_branch
      %59 = sbr.rel (0) target = $region33
    $region32: #{lstm_tagger_forward.1} parent=1 // pred_region
      %60 = dma.done [#allocation6], 16
    $region33: #{lstm_tagger_forward.1} parent=1 // pred_fallthru
      _
    // Predicated region
    $region34: #{lstm_tagger_forward.1} parent=1 // pred_check
      _
    $region35: #{lstm_tagger_forward.1} parent=1 // pred_check_branch
      %62 = sbr.rel (0) target = $region37
    $region36: #{lstm_tagger_forward.1} parent=1 // pred_region
      %63 = dma.done [#allocation4], 4096
    $region37: #{lstm_tagger_forward.1} parent=1 // pred_fallthru
      _
    // Predicated region
    $region38: #{lstm_tagger_forward.1} parent=1 // pred_check
      _
    $region39: #{lstm_tagger_forward.1} parent=1 // pred_check_branch
      %65 = sbr.rel (0) target = $region41
    $region40: #{lstm_tagger_forward.1} parent=1 // pred_region
      %66 = dma.done [#allocation9], 1024
    $region41: #{lstm_tagger_forward.1} parent=1 // pred_fallthru
      _
    %67 = sfence
    %s69 = sld [smem:[#allocation3]]
    %s70 = scalar_lea.vmem %s1, %s69
    %v71 = vld [vmem:[%s70] sm:$0x1]
    %s72 = sld [smem:[#allocation3 + $0x1]]
    %s73 = scalar_lea.vmem %s1, %s72
    %v74 = vld [vmem:[%s73] sm:$0x1]
    %s75 = sld [smem:[#allocation3 + $0x2]]
    %s76 = scalar_lea.vmem %s1, %s75
    %v77 = vld [vmem:[%s76] sm:$0x1]
    %s78 = sld [smem:[#allocation3 + $0x3]]
    %s79 = scalar_lea.vmem %s1, %s78
    %v80 = vld [vmem:[%s79] sm:$0x1]
    %s81 = sld [smem:[#allocation3 + $0x4]]
    %s82 = scalar_lea.vmem %s1, %s81
    %v83 = vld [vmem:[%s82] sm:$0x1]
    %s84 = sld [smem:[#allocation3 + $0x5]]
    %s85 = scalar_lea.vmem %s1, %s84
    %v86 = vld [vmem:[%s85] sm:$0x1]
    %s87 = sld [smem:[#allocation3 + $0x6]]
    %s88 = scalar_lea.vmem %s1, %s87
    %v89 = vld [vmem:[%s88] sm:$0x1]
    %s90 = sld [smem:[#allocation3 + $0x7]]
    %s91 = scalar_lea.vmem %s1, %s90
    %v92 = vld [vmem:[%s91] sm:$0x1]
    %v94 = vlaneseq
    %v95 = vshrl.u32 %v94, 7
    %v96 = vsub.s32 0, %v95
    %v97 = vrot.slane %v74, %v96
    %v100 = vlaneseq
    %v101 = vshrl.u32 %v100, 7
    %v102 = vsub.s32 0, %v101
    %v103 = vrot.slane %v77, %v102
    %v106 = vlaneseq
    %v107 = vshrl.u32 %v106, 7
    %v108 = vsub.s32 0, %v107
    %v109 = vrot.slane %v80, %v108
    %v112 = vlaneseq
    %v113 = vshrl.u32 %v112, 7
    %v114 = vsub.s32 0, %v113
    %v115 = vrot.slane %v83, %v114
    %v118 = vlaneseq
    %v119 = vshrl.u32 %v118, 7
    %v120 = vsub.s32 0, %v119
    %v121 = vrot.slane %v86, %v120
    %v124 = vlaneseq
    %v125 = vshrl.u32 %v124, 7
    %v126 = vsub.s32 0, %v125
    %v127 = vrot.slane %v89, %v126
    %v130 = vlaneseq
    %v131 = vshrl.u32 %v130, 7
    %v132 = vsub.s32 0, %v131
    %v133 = vrot.slane %v92, %v132
    %vm135 = vcmask 1040384
    %v136 = vsel %vm135, %v71, %v97
    %vm137 = vcmask 1041408
    %v138 = vsel %vm137, %v136, %v103
    %vm139 = vcmask 1042432
    %v140 = vsel %vm139, %v138, %v109
    %vm141 = vcmask 1043456
    %v142 = vsel %vm141, %v140, %v115
    %vm143 = vcmask 1044480
    %v144 = vsel %vm143, %v142, %v121
    %vm145 = vcmask 1045504
    %v146 = vsel %vm145, %v144, %v127
    %vm147 = vcmask 1046528
    %v148 = vsel %vm147, %v146, %v133
    %v149 = vpack.c.bf16 %v148, %v148
    %v150 = vld [vmem:[%s2] sm:$0xff]
    %v151 = vld [vmem:[%s2 + $0x8] sm:$0xff]
    %v152 = vld [vmem:[%s2 + $0x10] sm:$0xff]
    %v153 = vld [vmem:[%s2 + $0x18] sm:$0xff]
    %v154 = vld [vmem:[%s4] sm:$0xf]
    %v156 = vlaneseq
    %v157 = vshrl.u32 %v156, 7
    %v158 = vsub.s32 0, %v157
    %v159 = vrot.slane %v154, %v158
    %v160 = vlaneseq
    %v161 = vshrl.u32 %v160, 7
    %v162 = vsub.s32 1, %v161
    %v163 = vrot.slane %v154, %v162
    %v164 = vlaneseq
    %v165 = vshrl.u32 %v164, 7
    %v166 = vsub.s32 2, %v165
    %v167 = vrot.slane %v154, %v166
    %v168 = vlaneseq
    %v169 = vshrl.u32 %v168, 7
    %v170 = vsub.s32 3, %v169
    %v171 = vrot.slane %v154, %v170
    %v180 = vunpack.c.l.b16 %v150
    %v181 = vunpack.c.h.b16 %v150
    %v182 = vunpack.c.l.b16 %v151
    %v183 = vunpack.c.h.b16 %v151
    %v184 = vunpack.c.l.b16 %v152
    %v185 = vunpack.c.h.b16 %v152
    %v186 = vunpack.c.l.b16 %v153
    %v187 = vunpack.c.h.b16 %v153
    %v188 = vpack.c.b16 %v184, %v180
    %v189 = vpack.c.b16 %v185, %v181
    %v190 = vpack.c.b16 %v186, %v182
    %v191 = vpack.c.b16 %v187, %v183
    %vm196 = vcmask 130048
    %v198 = vsel %vm196, %v149, 0
    %200 = vmatprep.subr.bf16.mxu0 %v189
    %201 = vmatpush1.bf16.msra.mxu0 %v188
    %202 = vmatprep.subr.bf16.mxu0 0
    %203 = vmatpush1.bf16.msra.mxu0 0
    %204 = vmatprep.subr.bf16.mxu0 0
    %205 = vmatpush1.bf16.msra.mxu0 0
    %206 = vmatprep.subr.bf16.mxu0 0
    %207 = vmatpush1.bf16.msra.mxu0 0
    %208 = vmatprep.subr.bf16.mxu0 0
    %209 = vmatpush1.bf16.msra.mxu0 0
    %210 = vmatprep.subr.bf16.mxu0 0
    %211 = vmatpush1.bf16.msra.mxu0 0
    %212 = vmatprep.subr.bf16.mxu0 0
    %213 = vmatpush1.bf16.msra.mxu0 0
    %214 = vmatprep.subr.bf16.mxu0 0
    %215 = vmatpush1.bf16.msra.mxu0 0
    %216 = vmatprep.subr.bf16.mxu0 0
    %217 = vmatpush1.bf16.msra.mxu0 0
    %218 = vmatprep.subr.bf16.mxu0 0
    %219 = vmatpush1.bf16.msra.mxu0 0
    %220 = vmatprep.subr.bf16.mxu0 0
    %221 = vmatpush1.bf16.msra.mxu0 0
    %222 = vmatprep.subr.bf16.mxu0 0
    %223 = vmatpush1.bf16.msra.mxu0 0
    %224 = vmatprep.subr.bf16.mxu0 0
    %225 = vmatpush1.bf16.msra.mxu0 0
    %226 = vmatprep.subr.bf16.mxu0 0
    %227 = vmatpush1.bf16.msra.mxu0 0
    %228 = vmatprep.subr.bf16.mxu0 0
    %229 = vmatpush1.bf16.msra.mxu0 0
    %230 = vmatprep.subr.bf16.mxu0 0
    %231 = vmatpush1.bf16.msra.mxu0 0
    %232 = vmatprep.mubr.bf16.mxu0 0
    %233 = vmatmul.mubr.bf16.gmra.mrb[0].mxu0 %v198
    %v234 = vpop.f32.mrb[0].mxu0
    %v235 = vadd.f32 %v159, %v234
    %v236 = vpop.f32.mrb[0].mxu0
    %v237 = vadd.f32 %v163, %v236
    %v238 = vpop.f32.mrb[0].mxu0
    %v239 = vpop.f32.mrb[0].mxu0
    %240 = vdwg.mxu0
    %241 = vmatprep.subr.bf16.mxu0 %v191
    %242 = vmatpush1.bf16.msra.mxu0 %v190
    %243 = vmatprep.subr.bf16.mxu0 0
    %244 = vmatpush1.bf16.msra.mxu0 0
    %245 = vmatprep.subr.bf16.mxu0 0
    %246 = vmatpush1.bf16.msra.mxu0 0
    %247 = vmatprep.subr.bf16.mxu0 0
    %248 = vmatpush1.bf16.msra.mxu0 0
    %249 = vmatprep.subr.bf16.mxu0 0
    %250 = vmatpush1.bf16.msra.mxu0 0
    %251 = vmatprep.subr.bf16.mxu0 0
    %252 = vmatpush1.bf16.msra.mxu0 0
    %253 = vmatprep.subr.bf16.mxu0 0
    %254 = vmatpush1.bf16.msra.mxu0 0
    %255 = vmatprep.subr.bf16.mxu0 0
    %256 = vmatpush1.bf16.msra.mxu0 0
    %257 = vmatprep.subr.bf16.mxu0 0
    %258 = vmatpush1.bf16.msra.mxu0 0
    %259 = vmatprep.subr.bf16.mxu0 0
    %260 = vmatpush1.bf16.msra.mxu0 0
    %261 = vmatprep.subr.bf16.mxu0 0
    %262 = vmatpush1.bf16.msra.mxu0 0
    %263 = vmatprep.subr.bf16.mxu0 0
    %264 = vmatpush1.bf16.msra.mxu0 0
    %265 = vmatprep.subr.bf16.mxu0 0
    %266 = vmatpush1.bf16.msra.mxu0 0
    %267 = vmatprep.subr.bf16.mxu0 0
    %268 = vmatpush1.bf16.msra.mxu0 0
    %269 = vmatprep.subr.bf16.mxu0 0
    %270 = vmatpush1.bf16.msra.mxu0 0
    %271 = vmatprep.subr.bf16.mxu0 0
    %272 = vmatpush1.bf16.msra.mxu0 0
    %273 = vmatprep.mubr.bf16.mxu0 0
    %274 = vmatmul.mubr.bf16.gmra.mrb[0].mxu0 %v198
    %v275 = vpop.f32.mrb[0].mxu0
    %v276 = vadd.f32 %v167, %v275
    %v277 = vpop.f32.mrb[0].mxu0
    %v278 = vadd.f32 %v171, %v277
    %v279 = vpop.f32.mrb[0].mxu0
    %v280 = vpop.f32.mrb[0].mxu0
    %281 = vdwg.mxu0
    %282 = vst [vmem:[#allocation2] sm:$0xff] %v235
    %283 = vst [vmem:[#allocation2 + $0x8] sm:$0xff] %v237
    %284 = vst [vmem:[#allocation2 + $0x10] sm:$0xff] %v276
    %285 = vst [vmem:[#allocation2 + $0x18] sm:$0xff] %v278
    %v286 = vld [vmem:[#allocation2] ss:$8 sm:$0xf]
    %v287 = vld [vmem:[#allocation7] sm:$0xff]
    %v288 = vld [vmem:[#allocation7 + $0x8] sm:$0xff]
    %v289 = vld [vmem:[#allocation7 + $0x10] sm:$0xff]
    %v290 = vld [vmem:[#allocation7 + $0x18] sm:$0xff]
    %v291 = vld [vmem:[#allocation7 + $0x20] sm:$0xff]
    %v292 = vld [vmem:[#allocation7 + $0x28] sm:$0xff]
    %v293 = vld [vmem:[#allocation7 + $0x30] sm:$0xff]
    %v294 = vld [vmem:[#allocation7 + $0x38] sm:$0xff]
    %v295 = vld [vmem:[#allocation7 + $0x40] sm:$0xff]
    %v296 = vld [vmem:[#allocation7 + $0x48] sm:$0xff]
    %v297 = vld [vmem:[#allocation7 + $0x50] sm:$0xff]
    %v298 = vld [vmem:[#allocation7 + $0x58] sm:$0xff]
    %v299 = vld [vmem:[#allocation7 + $0x60] sm:$0xff]
    %v300 = vld [vmem:[#allocation7 + $0x68] sm:$0xff]
    %v301 = vld [vmem:[#allocation7 + $0x70] sm:$0xff]
    %v302 = vld [vmem:[#allocation7 + $0x78] sm:$0xff]
    %v303 = vld [vmem:[#allocation7 + $0x80] sm:$0xff]
    %v304 = vld [vmem:[#allocation7 + $0x88] sm:$0xff]
    %v305 = vld [vmem:[#allocation7 + $0x90] sm:$0xff]
    %v306 = vld [vmem:[#allocation7 + $0x98] sm:$0xff]
    %v307 = vld [vmem:[#allocation7 + $0xa0] sm:$0xff]
    %v308 = vld [vmem:[#allocation7 + $0xa8] sm:$0xff]
    %v309 = vld [vmem:[#allocation7 + $0xb0] sm:$0xff]
    %v310 = vld [vmem:[#allocation7 + $0xb8] sm:$0xff]
    %v311 = vld [vmem:[#allocation7 + $0xc0] sm:$0xff]
    %v312 = vld [vmem:[#allocation7 + $0xc8] sm:$0xff]
    %v313 = vld [vmem:[#allocation7 + $0xd0] sm:$0xff]
    %v314 = vld [vmem:[#allocation7 + $0xd8] sm:$0xff]
    %v315 = vld [vmem:[#allocation7 + $0xe0] sm:$0xff]
    %v316 = vld [vmem:[#allocation7 + $0xe8] sm:$0xff]
    %v317 = vld [vmem:[#allocation7 + $0xf0] sm:$0xff]
    %v318 = vld [vmem:[#allocation7 + $0xf8] sm:$0xff]
    %v351 = vunpack.c.l.b16 %v287
    %v352 = vunpack.c.h.b16 %v287
    %v353 = vunpack.c.l.b16 %v288
    %v354 = vunpack.c.h.b16 %v288
    %v355 = vunpack.c.l.b16 %v289
    %v356 = vunpack.c.h.b16 %v289
    %v357 = vunpack.c.l.b16 %v290
    %v358 = vunpack.c.h.b16 %v290
    %v359 = vunpack.c.l.b16 %v291
    %v360 = vunpack.c.h.b16 %v291
    %v361 = vunpack.c.l.b16 %v292
    %v362 = vunpack.c.h.b16 %v292
    %v363 = vunpack.c.l.b16 %v293
    %v364 = vunpack.c.h.b16 %v293
    %v365 = vunpack.c.l.b16 %v294
    %v366 = vunpack.c.h.b16 %v294
    %v367 = vunpack.c.l.b16 %v295
    %v368 = vunpack.c.h.b16 %v295
    %v369 = vunpack.c.l.b16 %v296
    %v370 = vunpack.c.h.b16 %v296
    %v371 = vunpack.c.l.b16 %v297
    %v372 = vunpack.c.h.b16 %v297
    %v373 = vunpack.c.l.b16 %v298
    %v374 = vunpack.c.h.b16 %v298
    %v375 = vunpack.c.l.b16 %v299
    %v376 = vunpack.c.h.b16 %v299
    %v377 = vunpack.c.l.b16 %v300
    %v378 = vunpack.c.h.b16 %v300
    %v379 = vunpack.c.l.b16 %v301
    %v380 = vunpack.c.h.b16 %v301
    %v381 = vunpack.c.l.b16 %v302
    %v382 = vunpack.c.h.b16 %v302
    %v383 = vunpack.c.l.b16 %v303
    %v384 = vunpack.c.h.b16 %v303
    %v385 = vunpack.c.l.b16 %v304
    %v386 = vunpack.c.h.b16 %v304
    %v387 = vunpack.c.l.b16 %v305
    %v388 = vunpack.c.h.b16 %v305
    %v389 = vunpack.c.l.b16 %v306
    %v390 = vunpack.c.h.b16 %v306
    %v391 = vunpack.c.l.b16 %v307
    %v392 = vunpack.c.h.b16 %v307
    %v393 = vunpack.c.l.b16 %v308
    %v394 = vunpack.c.h.b16 %v308
    %v395 = vunpack.c.l.b16 %v309
    %v396 = vunpack.c.h.b16 %v309
    %v397 = vunpack.c.l.b16 %v310
    %v398 = vunpack.c.h.b16 %v310
    %v399 = vunpack.c.l.b16 %v311
    %v400 = vunpack.c.h.b16 %v311
    %v401 = vunpack.c.l.b16 %v312
    %v402 = vunpack.c.h.b16 %v312
    %v403 = vunpack.c.l.b16 %v313
    %v404 = vunpack.c.h.b16 %v313
    %v405 = vunpack.c.l.b16 %v314
    %v406 = vunpack.c.h.b16 %v314
    %v407 = vunpack.c.l.b16 %v315
    %v408 = vunpack.c.h.b16 %v315
    %v409 = vunpack.c.l.b16 %v316
    %v410 = vunpack.c.h.b16 %v316
    %v411 = vunpack.c.l.b16 %v317
    %v412 = vunpack.c.h.b16 %v317
    %v413 = vunpack.c.l.b16 %v318
    %v414 = vunpack.c.h.b16 %v318
    %v415 = vpack.c.b16 %v355, %v351
    %v416 = vpack.c.b16 %v356, %v352
    %v417 = vpack.c.b16 %v357, %v353
    %v418 = vpack.c.b16 %v358, %v354
    %v419 = vpack.c.b16 %v363, %v359
    %v420 = vpack.c.b16 %v364, %v360
    %v421 = vpack.c.b16 %v365, %v361
    %v422 = vpack.c.b16 %v366, %v362
    %v423 = vpack.c.b16 %v371, %v367
    %v424 = vpack.c.b16 %v372, %v368
    %v425 = vpack.c.b16 %v373, %v369
    %v426 = vpack.c.b16 %v374, %v370
    %v427 = vpack.c.b16 %v379, %v375
    %v428 = vpack.c.b16 %v380, %v376
    %v429 = vpack.c.b16 %v381, %v377
    %v430 = vpack.c.b16 %v382, %v378
    %v431 = vpack.c.b16 %v387, %v383
    %v432 = vpack.c.b16 %v388, %v384
    %v433 = vpack.c.b16 %v389, %v385
    %v434 = vpack.c.b16 %v390, %v386
    %v435 = vpack.c.b16 %v395, %v391
    %v436 = vpack.c.b16 %v396, %v392
    %v437 = vpack.c.b16 %v397, %v393
    %v438 = vpack.c.b16 %v398, %v394
    %v439 = vpack.c.b16 %v403, %v399
    %v440 = vpack.c.b16 %v404, %v400
    %v441 = vpack.c.b16 %v405, %v401
    %v442 = vpack.c.b16 %v406, %v402
    %v443 = vpack.c.b16 %v411, %v407
    %v444 = vpack.c.b16 %v412, %v408
    %v445 = vpack.c.b16 %v413, %v409
    %v446 = vpack.c.b16 %v414, %v410
    %479 = vmatprep.subr.bf16.mxu0 %v416
    %480 = vmatpush1.bf16.msra.mxu0 %v415
    %481 = vmatprep.subr.bf16.mxu0 %v420
    %482 = vmatpush1.bf16.msra.mxu0 %v419
    %483 = vmatprep.subr.bf16.mxu0 %v424
    %484 = vmatpush1.bf16.msra.mxu0 %v423
    %485 = vmatprep.subr.bf16.mxu0 %v428
    %486 = vmatpush1.bf16.msra.mxu0 %v427
    %487 = vmatprep.subr.bf16.mxu0 %v432
    %488 = vmatpush1.bf16.msra.mxu0 %v431
    %489 = vmatprep.subr.bf16.mxu0 %v436
    %490 = vmatpush1.bf16.msra.mxu0 %v435
    %491 = vmatprep.subr.bf16.mxu0 %v440
    %492 = vmatpush1.bf16.msra.mxu0 %v439
    %493 = vmatprep.subr.bf16.mxu0 %v444
    %494 = vmatpush1.bf16.msra.mxu0 %v443
    %495 = vmatprep.subr.bf16.mxu0 0
    %496 = vmatpush1.bf16.msra.mxu0 0
    %497 = vmatprep.subr.bf16.mxu0 0
    %498 = vmatpush1.bf16.msra.mxu0 0
    %499 = vmatprep.subr.bf16.mxu0 0
    %500 = vmatpush1.bf16.msra.mxu0 0
    %501 = vmatprep.subr.bf16.mxu0 0
    %502 = vmatpush1.bf16.msra.mxu0 0
    %503 = vmatprep.subr.bf16.mxu0 0
    %504 = vmatpush1.bf16.msra.mxu0 0
    %505 = vmatprep.subr.bf16.mxu0 0
    %506 = vmatpush1.bf16.msra.mxu0 0
    %507 = vmatprep.subr.bf16.mxu0 0
    %508 = vmatpush1.bf16.msra.mxu0 0
    %509 = vmatprep.subr.bf16.mxu0 0
    %510 = vmatpush1.bf16.msra.mxu0 0
    %511 = vmatprep.mubr.bf16.mxu0 0
    %512 = vmatmul.mubr.bf16.gmra.mrb[0].mxu0 0
    %v513 = vpop.f32.mrb[0].mxu0
    %v514 = vadd.f32 0.0, %v513
    %v515 = vpop.f32.mrb[0].mxu0
    %v516 = vadd.f32 0.0, %v515
    %v517 = vpop.f32.mrb[0].mxu0
    %v518 = vpop.f32.mrb[0].mxu0
    %519 = vdwg.mxu0
    %520 = vmatprep.subr.bf16.mxu0 %v418
    %521 = vmatpush1.bf16.msra.mxu0 %v417
    %522 = vmatprep.subr.bf16.mxu0 %v422
    %523 = vmatpush1.bf16.msra.mxu0 %v421
    %524 = vmatprep.subr.bf16.mxu0 %v426
    %525 = vmatpush1.bf16.msra.mxu0 %v425
    %526 = vmatprep.subr.bf16.mxu0 %v430
    %527 = vmatpush1.bf16.msra.mxu0 %v429
    %528 = vmatprep.subr.bf16.mxu0 %v434
    %529 = vmatpush1.bf16.msra.mxu0 %v433
    %530 = vmatprep.subr.bf16.mxu0 %v438
    %531 = vmatpush1.bf16.msra.mxu0 %v437
    %532 = vmatprep.subr.bf16.mxu0 %v442
    %533 = vmatpush1.bf16.msra.mxu0 %v441
    %534 = vmatprep.subr.bf16.mxu0 %v446
    %535 = vmatpush1.bf16.msra.mxu0 %v445
    %536 = vmatprep.subr.bf16.mxu0 0
    %537 = vmatpush1.bf16.msra.mxu0 0
    %538 = vmatprep.subr.bf16.mxu0 0
    %539 = vmatpush1.bf16.msra.mxu0 0
    %540 = vmatprep.subr.bf16.mxu0 0
    %541 = vmatpush1.bf16.msra.mxu0 0
    %542 = vmatprep.subr.bf16.mxu0 0
    %543 = vmatpush1.bf16.msra.mxu0 0
    %544 = vmatprep.subr.bf16.mxu0 0
    %545 = vmatpush1.bf16.msra.mxu0 0
    %546 = vmatprep.subr.bf16.mxu0 0
    %547 = vmatpush1.bf16.msra.mxu0 0
    %548 = vmatprep.subr.bf16.mxu0 0
    %549 = vmatpush1.bf16.msra.mxu0 0
    %550 = vmatprep.subr.bf16.mxu0 0
    %551 = vmatpush1.bf16.msra.mxu0 0
    %552 = vmatprep.mubr.bf16.mxu0 0
    %553 = vmatmul.mubr.bf16.gmra.mrb[0].mxu0 0
    %v554 = vpop.f32.mrb[0].mxu0
    %v555 = vadd.f32 0.0, %v554
    %v556 = vpop.f32.mrb[0].mxu0
    %v557 = vadd.f32 0.0, %v556
    %v558 = vpop.f32.mrb[0].mxu0
    %v559 = vpop.f32.mrb[0].mxu0
    %560 = vdwg.mxu0
    %v565 = vcombine.low %v514, %v516
    %v566 = vcombine.low %v555, %v557
    %v568 = vunpack.c.l.s4 1966171168
    %v569 = vunpack.c.0.s8 %v568
    %v570 = vlaneseq
    %v571 = vshrl.u32 %v570, 7
    %v572 = vsub.s32 %v569, %v571
    %v573 = vrot.slane %v565, %v572
    %v575 = vunpack.c.l.s4 1966171168
    %v576 = vunpack.c.0.s8 %v575
    %v577 = vlaneseq
    %v578 = vshrl.u32 %v577, 7
    %v579 = vsub.s32 %v576, %v578
    %v580 = vrot.slane %v566, %v579
    %v581 = vcombine.low %v573, %v580
    %v583 = vunpack.c.l.s4 1966171168
    %v584 = vunpack.c.0.s8 %v583
    %v585 = vlaneseq
    %v586 = vshrl.u32 %v585, 7
    %v587 = vsub.s32 %v584, %v586
    %v588 = vrot.slane %v581, %v587
    %v590 = vadd.f32 %v286, %v588
    %v591 = vxor.u32 %v590, 2147483648
    %v592 = vmul.f32 %v591, 1.442695
    %v593 = vpow.pop %v592
    %v594 = vadd.f32 %v593, 1.0
    %v595 = vrcp.pop %v594
    %v596 = vmul.f32 1.0, %v595
    %v598 = vrot.slane %v590, 2
    %v600 = vtanh.pop %v598
    %v601 = vrot.slane %v590, 3
    %v603 = vxor.u32 %v601, 2147483648
    %v604 = vmul.f32 %v603, 1.442695
    %v605 = vpow.pop %v604
    %v606 = vadd.f32 %v605, 1.0
    %v607 = vrcp.pop %v606
    %v608 = vmul.f32 1.0, %v607
    %v610 = vrot.slane %v596, 1
    %v612 = vmul.f32 %v610, 0.0
    %v613 = vmul.f32 %v596, %v600
    %v614 = vadd.f32 %v612, %v613
    %v615 = vtanh.pop %v614
    %v616 = vmul.f32 %v608, %v615
    %s617 = scalar_lea.vmem [#allocation2], 1
    %v618 = vld [vmem:[%s617] ss:$8 sm:$0xf]
    %v619 = vpack.c.bf16 %v616, %v616
    %620 = vmatprep.subr.bf16.mxu0 %v416
    %621 = vmatpush1.bf16.msra.mxu0 %v415
    %622 = vmatprep.subr.bf16.mxu0 %v420
    %623 = vmatpush1.bf16.msra.mxu0 %v419
    %624 = vmatprep.subr.bf16.mxu0 %v424
    %625 = vmatpush1.bf16.msra.mxu0 %v423
    %626 = vmatprep.subr.bf16.mxu0 %v428
    %627 = vmatpush1.bf16.msra.mxu0 %v427
    %628 = vmatprep.subr.bf16.mxu0 %v432
    %629 = vmatpush1.bf16.msra.mxu0 %v431
    %630 = vmatprep.subr.bf16.mxu0 %v436
    %631 = vmatpush1.bf16.msra.mxu0 %v435
    %632 = vmatprep.subr.bf16.mxu0 %v440
    %633 = vmatpush1.bf16.msra.mxu0 %v439
    %634 = vmatprep.subr.bf16.mxu0 %v444
    %635 = vmatpush1.bf16.msra.mxu0 %v443
    %636 = vmatprep.subr.bf16.mxu0 0
    %637 = vmatpush1.bf16.msra.mxu0 0
    %638 = vmatprep.subr.bf16.mxu0 0
    %639 = vmatpush1.bf16.msra.mxu0 0
    %640 = vmatprep.subr.bf16.mxu0 0
    %641 = vmatpush1.bf16.msra.mxu0 0
    %642 = vmatprep.subr.bf16.mxu0 0
    %643 = vmatpush1.bf16.msra.mxu0 0
    %644 = vmatprep.subr.bf16.mxu0 0
    %645 = vmatpush1.bf16.msra.mxu0 0
    %646 = vmatprep.subr.bf16.mxu0 0
    %647 = vmatpush1.bf16.msra.mxu0 0
    %648 = vmatprep.subr.bf16.mxu0 0
    %649 = vmatpush1.bf16.msra.mxu0 0
    %650 = vmatprep.subr.bf16.mxu0 0
    %651 = vmatpush1.bf16.msra.mxu0 0
    %652 = vmatprep.mubr.bf16.mxu0 0
    %653 = vmatmul.mubr.bf16.gmra.mrb[0].mxu0 %v619
    %v654 = vpop.f32.mrb[0].mxu0
    %v655 = vadd.f32 0.0, %v654
    %v656 = vpop.f32.mrb[0].mxu0
    %v657 = vadd.f32 0.0, %v656
    %v658 = vpop.f32.mrb[0].mxu0
    %v659 = vpop.f32.mrb[0].mxu0
    %660 = vdwg.mxu0
    %661 = vmatprep.subr.bf16.mxu0 %v418
    %662 = vmatpush1.bf16.msra.mxu0 %v417
    %663 = vmatprep.subr.bf16.mxu0 %v422
    %664 = vmatpush1.bf16.msra.mxu0 %v421
    %665 = vmatprep.subr.bf16.mxu0 %v426
    %666 = vmatpush1.bf16.msra.mxu0 %v425
    %667 = vmatprep.subr.bf16.mxu0 %v430
    %668 = vmatpush1.bf16.msra.mxu0 %v429
    %669 = vmatprep.subr.bf16.mxu0 %v434
    %670 = vmatpush1.bf16.msra.mxu0 %v433
    %671 = vmatprep.subr.bf16.mxu0 %v438
    %672 = vmatpush1.bf16.msra.mxu0 %v437
    %673 = vmatprep.subr.bf16.mxu0 %v442
    %674 = vmatpush1.bf16.msra.mxu0 %v441
    %675 = vmatprep.subr.bf16.mxu0 %v446
    %676 = vmatpush1.bf16.msra.mxu0 %v445
    %677 = vmatprep.subr.bf16.mxu0 0
    %678 = vmatpush1.bf16.msra.mxu0 0
    %679 = vmatprep.subr.bf16.mxu0 0
    %680 = vmatpush1.bf16.msra.mxu0 0
    %681 = vmatprep.subr.bf16.mxu0 0
    %682 = vmatpush1.bf16.msra.mxu0 0
    %683 = vmatprep.subr.bf16.mxu0 0
    %684 = vmatpush1.bf16.msra.mxu0 0
    %685 = vmatprep.subr.bf16.mxu0 0
    %686 = vmatpush1.bf16.msra.mxu0 0
    %687 = vmatprep.subr.bf16.mxu0 0
    %688 = vmatpush1.bf16.msra.mxu0 0
    %689 = vmatprep.subr.bf16.mxu0 0
    %690 = vmatpush1.bf16.msra.mxu0 0
    %691 = vmatprep.subr.bf16.mxu0 0
    %692 = vmatpush1.bf16.msra.mxu0 0
    %693 = vmatprep.mubr.bf16.mxu0 0
    %694 = vmatmul.mubr.bf16.gmra.mrb[0].mxu0 %v619
    %v695 = vpop.f32.mrb[0].mxu0
    %v696 = vadd.f32 0.0, %v695
    %v697 = vpop.f32.mrb[0].mxu0
    %v698 = vadd.f32 0.0, %v697
    %v699 = vpop.f32.mrb[0].mxu0
    %v700 = vpop.f32.mrb[0].mxu0
    %701 = vdwg.mxu0
    %v706 = vcombine.low %v655, %v657
    %v707 = vcombine.low %v696, %v698
    %v709 = vunpack.c.l.s4 1966171168
    %v710 = vunpack.c.0.s8 %v709
    %v711 = vlaneseq
    %v712 = vshrl.u32 %v711, 7
    %v713 = vsub.s32 %v710, %v712
    %v714 = vrot.slane %v706, %v713
    %v716 = vunpack.c.l.s4 1966171168
    %v717 = vunpack.c.0.s8 %v716
    %v718 = vlaneseq
    %v719 = vshrl.u32 %v718, 7
    %v720 = vsub.s32 %v717, %v719
    %v721 = vrot.slane %v707, %v720
    %v722 = vcombine.low %v714, %v721
    %v724 = vunpack.c.l.s4 1966171168
    %v725 = vunpack.c.0.s8 %v724
    %v726 = vlaneseq
    %v727 = vshrl.u32 %v726, 7
    %v728 = vsub.s32 %v725, %v727
    %v729 = vrot.slane %v722, %v728
    %v731 = vadd.f32 %v618, %v729
    %v732 = vxor.u32 %v731, 2147483648
    %v733 = vmul.f32 %v732, 1.442695
    %v734 = vpow.pop %v733
    %v735 = vadd.f32 %v734, 1.0
    %v736 = vrcp.pop %v735
    %v737 = vmul.f32 1.0, %v736
    %v739 = vrot.slane %v731, 2
    %v741 = vtanh.pop %v739
    %v742 = vrot.slane %v731, 3
    %v744 = vxor.u32 %v742, 2147483648
    %v745 = vmul.f32 %v744, 1.442695
    %v746 = vpow.pop %v745
    %v747 = vadd.f32 %v746, 1.0
    %v748 = vrcp.pop %v747
    %v749 = vmul.f32 1.0, %v748
    %v751 = vrot.slane %v737, 1
    %v753 = vmul.f32 %v751, %v614
    %v754 = vmul.f32 %v737, %v741
    %v755 = vadd.f32 %v753, %v754
    %v756 = vtanh.pop %v755
    %v757 = vmul.f32 %v749, %v756
    %s758 = scalar_lea.vmem [#allocation2], 2
    %v759 = vld [vmem:[%s758] ss:$8 sm:$0xf]
    %v760 = vpack.c.bf16 %v757, %v757
    %761 = vmatprep.subr.bf16.mxu0 %v416
    %762 = vmatpush1.bf16.msra.mxu0 %v415
    %763 = vmatprep.subr.bf16.mxu0 %v420
    %764 = vmatpush1.bf16.msra.mxu0 %v419
    %765 = vmatprep.subr.bf16.mxu0 %v424
    %766 = vmatpush1.bf16.msra.mxu0 %v423
    %767 = vmatprep.subr.bf16.mxu0 %v428
    %768 = vmatpush1.bf16.msra.mxu0 %v427
    %769 = vmatprep.subr.bf16.mxu0 %v432
    %770 = vmatpush1.bf16.msra.mxu0 %v431
    %771 = vmatprep.subr.bf16.mxu0 %v436
    %772 = vmatpush1.bf16.msra.mxu0 %v435
    %773 = vmatprep.subr.bf16.mxu0 %v440
    %774 = vmatpush1.bf16.msra.mxu0 %v439
    %775 = vmatprep.subr.bf16.mxu0 %v444
    %776 = vmatpush1.bf16.msra.mxu0 %v443
    %777 = vmatprep.subr.bf16.mxu0 0
    %778 = vmatpush1.bf16.msra.mxu0 0
    %779 = vmatprep.subr.bf16.mxu0 0
    %780 = vmatpush1.bf16.msra.mxu0 0
    %781 = vmatprep.subr.bf16.mxu0 0
    %782 = vmatpush1.bf16.msra.mxu0 0
    %783 = vmatprep.subr.bf16.mxu0 0
    %784 = vmatpush1.bf16.msra.mxu0 0
    %785 = vmatprep.subr.bf16.mxu0 0
    %786 = vmatpush1.bf16.msra.mxu0 0
    %787 = vmatprep.subr.bf16.mxu0 0
    %788 = vmatpush1.bf16.msra.mxu0 0
    %789 = vmatprep.subr.bf16.mxu0 0
    %790 = vmatpush1.bf16.msra.mxu0 0
    %791 = vmatprep.subr.bf16.mxu0 0
    %792 = vmatpush1.bf16.msra.mxu0 0
    %793 = vmatprep.mubr.bf16.mxu0 0
    %794 = vmatmul.mubr.bf16.gmra.mrb[0].mxu0 %v760
    %v795 = vpop.f32.mrb[0].mxu0
    %v796 = vadd.f32 0.0, %v795
    %v797 = vpop.f32.mrb[0].mxu0
    %v798 = vadd.f32 0.0, %v797
    %v799 = vpop.f32.mrb[0].mxu0
    %v800 = vpop.f32.mrb[0].mxu0
    %801 = vdwg.mxu0
    %802 = vmatprep.subr.bf16.mxu0 %v418
    %803 = vmatpush1.bf16.msra.mxu0 %v417
    %804 = vmatprep.subr.bf16.mxu0 %v422
    %805 = vmatpush1.bf16.msra.mxu0 %v421
    %806 = vmatprep.subr.bf16.mxu0 %v426
    %807 = vmatpush1.bf16.msra.mxu0 %v425
    %808 = vmatprep.subr.bf16.mxu0 %v430
    %809 = vmatpush1.bf16.msra.mxu0 %v429
    %810 = vmatprep.subr.bf16.mxu0 %v434
    %811 = vmatpush1.bf16.msra.mxu0 %v433
    %812 = vmatprep.subr.bf16.mxu0 %v438
    %813 = vmatpush1.bf16.msra.mxu0 %v437
    %814 = vmatprep.subr.bf16.mxu0 %v442
    %815 = vmatpush1.bf16.msra.mxu0 %v441
    %816 = vmatprep.subr.bf16.mxu0 %v446
    %817 = vmatpush1.bf16.msra.mxu0 %v445
    %818 = vmatprep.subr.bf16.mxu0 0
    %819 = vmatpush1.bf16.msra.mxu0 0
    %820 = vmatprep.subr.bf16.mxu0 0
    %821 = vmatpush1.bf16.msra.mxu0 0
    %822 = vmatprep.subr.bf16.mxu0 0
    %823 = vmatpush1.bf16.msra.mxu0 0
    %824 = vmatprep.subr.bf16.mxu0 0
    %825 = vmatpush1.bf16.msra.mxu0 0
    %826 = vmatprep.subr.bf16.mxu0 0
    %827 = vmatpush1.bf16.msra.mxu0 0
    %828 = vmatprep.subr.bf16.mxu0 0
    %829 = vmatpush1.bf16.msra.mxu0 0
    %830 = vmatprep.subr.bf16.mxu0 0
    %831 = vmatpush1.bf16.msra.mxu0 0
    %832 = vmatprep.subr.bf16.mxu0 0
    %833 = vmatpush1.bf16.msra.mxu0 0
    %834 = vmatprep.mubr.bf16.mxu0 0
    %835 = vmatmul.mubr.bf16.gmra.mrb[0].mxu0 %v760
    %v836 = vpop.f32.mrb[0].mxu0
    %v837 = vadd.f32 0.0, %v836
    %v838 = vpop.f32.mrb[0].mxu0
    %v839 = vadd.f32 0.0, %v838
    %v840 = vpop.f32.mrb[0].mxu0
    %v841 = vpop.f32.mrb[0].mxu0
    %842 = vdwg.mxu0
    %v847 = vcombine.low %v796, %v798
    %v848 = vcombine.low %v837, %v839
    %v850 = vunpack.c.l.s4 1966171168
    %v851 = vunpack.c.0.s8 %v850
    %v852 = vlaneseq
    %v853 = vshrl.u32 %v852, 7
    %v854 = vsub.s32 %v851, %v853
    %v855 = vrot.slane %v847, %v854
    %v857 = vunpack.c.l.s4 1966171168
    %v858 = vunpack.c.0.s8 %v857
    %v859 = vlaneseq
    %v860 = vshrl.u32 %v859, 7
    %v861 = vsub.s32 %v858, %v860
    %v862 = vrot.slane %v848, %v861
    %v863 = vcombine.low %v855, %v862
    %v865 = vunpack.c.l.s4 1966171168
    %v866 = vunpack.c.0.s8 %v865
    %v867 = vlaneseq
    %v868 = vshrl.u32 %v867, 7
    %v869 = vsub.s32 %v866, %v868
    %v870 = vrot.slane %v863, %v869
    %v872 = vadd.f32 %v759, %v870
    %v873 = vxor.u32 %v872, 2147483648
    %v874 = vmul.f32 %v873, 1.442695
    %v875 = vpow.pop %v874
    %v876 = vadd.f32 %v875, 1.0
    %v877 = vrcp.pop %v876
    %v878 = vmul.f32 1.0, %v877
    %v880 = vrot.slane %v872, 2
    %v882 = vtanh.pop %v880
    %v883 = vrot.slane %v872, 3
    %v885 = vxor.u32 %v883, 2147483648
    %v886 = vmul.f32 %v885, 1.442695
    %v887 = vpow.pop %v886
    %v888 = vadd.f32 %v887, 1.0
    %v889 = vrcp.pop %v888
    %v890 = vmul.f32 1.0, %v889
    %v892 = vrot.slane %v878, 1
    %v894 = vmul.f32 %v892, %v755
    %v895 = vmul.f32 %v878, %v882
    %v896 = vadd.f32 %v894, %v895
    %v897 = vtanh.pop %v896
    %v898 = vmul.f32 %v890, %v897
    %s899 = scalar_lea.vmem [#allocation2], 3
    %v900 = vld [vmem:[%s899] ss:$8 sm:$0xf]
    %v901 = vpack.c.bf16 %v898, %v898
    %902 = vmatprep.subr.bf16.mxu0 %v416
    %903 = vmatpush1.bf16.msra.mxu0 %v415
    %904 = vmatprep.subr.bf16.mxu0 %v420
    %905 = vmatpush1.bf16.msra.mxu0 %v419
    %906 = vmatprep.subr.bf16.mxu0 %v424
    %907 = vmatpush1.bf16.msra.mxu0 %v423
    %908 = vmatprep.subr.bf16.mxu0 %v428
    %909 = vmatpush1.bf16.msra.mxu0 %v427
    %910 = vmatprep.subr.bf16.mxu0 %v432
    %911 = vmatpush1.bf16.msra.mxu0 %v431
    %912 = vmatprep.subr.bf16.mxu0 %v436
    %913 = vmatpush1.bf16.msra.mxu0 %v435
    %914 = vmatprep.subr.bf16.mxu0 %v440
    %915 = vmatpush1.bf16.msra.mxu0 %v439
    %916 = vmatprep.subr.bf16.mxu0 %v444
    %917 = vmatpush1.bf16.msra.mxu0 %v443
    %918 = vmatprep.subr.bf16.mxu0 0
    %919 = vmatpush1.bf16.msra.mxu0 0
    %920 = vmatprep.subr.bf16.mxu0 0
    %921 = vmatpush1.bf16.msra.mxu0 0
    %922 = vmatprep.subr.bf16.mxu0 0
    %923 = vmatpush1.bf16.msra.mxu0 0
    %924 = vmatprep.subr.bf16.mxu0 0
    %925 = vmatpush1.bf16.msra.mxu0 0
    %926 = vmatprep.subr.bf16.mxu0 0
    %927 = vmatpush1.bf16.msra.mxu0 0
    %928 = vmatprep.subr.bf16.mxu0 0
    %929 = vmatpush1.bf16.msra.mxu0 0
    %930 = vmatprep.subr.bf16.mxu0 0
    %931 = vmatpush1.bf16.msra.mxu0 0
    %932 = vmatprep.subr.bf16.mxu0 0
    %933 = vmatpush1.bf16.msra.mxu0 0
    %934 = vmatprep.mubr.bf16.mxu0 0
    %935 = vmatmul.mubr.bf16.gmra.mrb[0].mxu0 %v901
    %v936 = vpop.f32.mrb[0].mxu0
    %v937 = vadd.f32 0.0, %v936
    %v938 = vpop.f32.mrb[0].mxu0
    %v939 = vadd.f32 0.0, %v938
    %v940 = vpop.f32.mrb[0].mxu0
    %v941 = vpop.f32.mrb[0].mxu0
    %942 = vdwg.mxu0
    %943 = vmatprep.subr.bf16.mxu0 %v418
    %944 = vmatpush1.bf16.msra.mxu0 %v417
    %945 = vmatprep.subr.bf16.mxu0 %v422
    %946 = vmatpush1.bf16.msra.mxu0 %v421
    %947 = vmatprep.subr.bf16.mxu0 %v426
    %948 = vmatpush1.bf16.msra.mxu0 %v425
    %949 = vmatprep.subr.bf16.mxu0 %v430
    %950 = vmatpush1.bf16.msra.mxu0 %v429
    %951 = vmatprep.subr.bf16.mxu0 %v434
    %952 = vmatpush1.bf16.msra.mxu0 %v433
    %953 = vmatprep.subr.bf16.mxu0 %v438
    %954 = vmatpush1.bf16.msra.mxu0 %v437
    %955 = vmatprep.subr.bf16.mxu0 %v442
    %956 = vmatpush1.bf16.msra.mxu0 %v441
    %957 = vmatprep.subr.bf16.mxu0 %v446
    %958 = vmatpush1.bf16.msra.mxu0 %v445
    %959 = vmatprep.subr.bf16.mxu0 0
    %960 = vmatpush1.bf16.msra.mxu0 0
    %961 = vmatprep.subr.bf16.mxu0 0
    %962 = vmatpush1.bf16.msra.mxu0 0
    %963 = vmatprep.subr.bf16.mxu0 0
    %964 = vmatpush1.bf16.msra.mxu0 0
    %965 = vmatprep.subr.bf16.mxu0 0
    %966 = vmatpush1.bf16.msra.mxu0 0
    %967 = vmatprep.subr.bf16.mxu0 0
    %968 = vmatpush1.bf16.msra.mxu0 0
    %969 = vmatprep.subr.bf16.mxu0 0
    %970 = vmatpush1.bf16.msra.mxu0 0
    %971 = vmatprep.subr.bf16.mxu0 0
    %972 = vmatpush1.bf16.msra.mxu0 0
    %973 = vmatprep.subr.bf16.mxu0 0
    %974 = vmatpush1.bf16.msra.mxu0 0
    %975 = vmatprep.mubr.bf16.mxu0 0
    %976 = vmatmul.mubr.bf16.gmra.mrb[0].mxu0 %v901
    %v977 = vpop.f32.mrb[0].mxu0
    %v978 = vadd.f32 0.0, %v977
    %v979 = vpop.f32.mrb[0].mxu0
    %v980 = vadd.f32 0.0, %v979
    %v981 = vpop.f32.mrb[0].mxu0
    %v982 = vpop.f32.mrb[0].mxu0
    %983 = vdwg.mxu0
    %v988 = vcombine.low %v937, %v939
    %v989 = vcombine.low %v978, %v980
    %v991 = vunpack.c.l.s4 1966171168
    %v992 = vunpack.c.0.s8 %v991
    %v993 = vlaneseq
    %v994 = vshrl.u32 %v993, 7
    %v995 = vsub.s32 %v992, %v994
    %v996 = vrot.slane %v988, %v995
    %v998 = vunpack.c.l.s4 1966171168
    %v999 = vunpack.c.0.s8 %v998
    %v1000 = vlaneseq
    %v1001 = vshrl.u32 %v1000, 7
    %v1002 = vsub.s32 %v999, %v1001
    %v1003 = vrot.slane %v989, %v1002
    %v1004 = vcombine.low %v996, %v1003
    %v1006 = vunpack.c.l.s4 1966171168
    %v1007 = vunpack.c.0.s8 %v1006
    %v1008 = vlaneseq
    %v1009 = vshrl.u32 %v1008, 7
    %v1010 = vsub.s32 %v1007, %v1009
    %v1011 = vrot.slane %v1004, %v1010
    %v1013 = vadd.f32 %v900, %v1011
    %v1014 = vxor.u32 %v1013, 2147483648
    %v1015 = vmul.f32 %v1014, 1.442695
    %v1016 = vpow.pop %v1015
    %v1017 = vadd.f32 %v1016, 1.0
    %v1018 = vrcp.pop %v1017
    %v1019 = vmul.f32 1.0, %v1018
    %v1021 = vrot.slane %v1013, 2
    %v1023 = vtanh.pop %v1021
    %v1024 = vrot.slane %v1013, 3
    %v1026 = vxor.u32 %v1024, 2147483648
    %v1027 = vmul.f32 %v1026, 1.442695
    %v1028 = vpow.pop %v1027
    %v1029 = vadd.f32 %v1028, 1.0
    %v1030 = vrcp.pop %v1029
    %v1031 = vmul.f32 1.0, %v1030
    %v1033 = vrot.slane %v1019, 1
    %v1035 = vmul.f32 %v1033, %v896
    %v1036 = vmul.f32 %v1019, %v1023
    %v1037 = vadd.f32 %v1035, %v1036
    %v1038 = vtanh.pop %v1037
    %v1039 = vmul.f32 %v1031, %v1038
    %s1040 = scalar_lea.vmem [#allocation2], 4
    %v1041 = vld [vmem:[%s1040] ss:$8 sm:$0xf]
    %v1042 = vpack.c.bf16 %v1039, %v1039
    %1043 = vmatprep.subr.bf16.mxu0 %v416
    %1044 = vmatpush1.bf16.msra.mxu0 %v415
    %1045 = vmatprep.subr.bf16.mxu0 %v420
    %1046 = vmatpush1.bf16.msra.mxu0 %v419
    %1047 = vmatprep.subr.bf16.mxu0 %v424
    %1048 = vmatpush1.bf16.msra.mxu0 %v423
    %1049 = vmatprep.subr.bf16.mxu0 %v428
    %1050 = vmatpush1.bf16.msra.mxu0 %v427
    %1051 = vmatprep.subr.bf16.mxu0 %v432
    %1052 = vmatpush1.bf16.msra.mxu0 %v431
    %1053 = vmatprep.subr.bf16.mxu0 %v436
    %1054 = vmatpush1.bf16.msra.mxu0 %v435
    %1055 = vmatprep.subr.bf16.mxu0 %v440
    %1056 = vmatpush1.bf16.msra.mxu0 %v439
    %1057 = vmatprep.subr.bf16.mxu0 %v444
    %1058 = vmatpush1.bf16.msra.mxu0 %v443
    %1059 = vmatprep.subr.bf16.mxu0 0
    %1060 = vmatpush1.bf16.msra.mxu0 0
    %1061 = vmatprep.subr.bf16.mxu0 0
    %1062 = vmatpush1.bf16.msra.mxu0 0
    %1063 = vmatprep.subr.bf16.mxu0 0
    %1064 = vmatpush1.bf16.msra.mxu0 0
    %1065 = vmatprep.subr.bf16.mxu0 0
    %1066 = vmatpush1.bf16.msra.mxu0 0
    %1067 = vmatprep.subr.bf16.mxu0 0
    %1068 = vmatpush1.bf16.msra.mxu0 0
    %1069 = vmatprep.subr.bf16.mxu0 0
    %1070 = vmatpush1.bf16.msra.mxu0 0
    %1071 = vmatprep.subr.bf16.mxu0 0
    %1072 = vmatpush1.bf16.msra.mxu0 0
    %1073 = vmatprep.subr.bf16.mxu0 0
    %1074 = vmatpush1.bf16.msra.mxu0 0
    %1075 = vmatprep.mubr.bf16.mxu0 0
    %1076 = vmatmul.mubr.bf16.gmra.mrb[0].mxu0 %v1042
    %v1077 = vpop.f32.mrb[0].mxu0
    %v1078 = vadd.f32 0.0, %v1077
    %v1079 = vpop.f32.mrb[0].mxu0
    %v1080 = vadd.f32 0.0, %v1079
    %v1081 = vpop.f32.mrb[0].mxu0
    %v1082 = vpop.f32.mrb[0].mxu0
    %1083 = vdwg.mxu0
    %1084 = vmatprep.subr.bf16.mxu0 %v418
    %1085 = vmatpush1.bf16.msra.mxu0 %v417
    %1086 = vmatprep.subr.bf16.mxu0 %v422
    %1087 = vmatpush1.bf16.msra.mxu0 %v421
    %1088 = vmatprep.subr.bf16.mxu0 %v426
    %1089 = vmatpush1.bf16.msra.mxu0 %v425
    %1090 = vmatprep.subr.bf16.mxu0 %v430
    %1091 = vmatpush1.bf16.msra.mxu0 %v429
    %1092 = vmatprep.subr.bf16.mxu0 %v434
    %1093 = vmatpush1.bf16.msra.mxu0 %v433
    %1094 = vmatprep.subr.bf16.mxu0 %v438
    %1095 = vmatpush1.bf16.msra.mxu0 %v437
    %1096 = vmatprep.subr.bf16.mxu0 %v442
    %1097 = vmatpush1.bf16.msra.mxu0 %v441
    %1098 = vmatprep.subr.bf16.mxu0 %v446
    %1099 = vmatpush1.bf16.msra.mxu0 %v445
    %1100 = vmatprep.subr.bf16.mxu0 0
    %1101 = vmatpush1.bf16.msra.mxu0 0
    %1102 = vmatprep.subr.bf16.mxu0 0
    %1103 = vmatpush1.bf16.msra.mxu0 0
    %1104 = vmatprep.subr.bf16.mxu0 0
    %1105 = vmatpush1.bf16.msra.mxu0 0
    %1106 = vmatprep.subr.bf16.mxu0 0
    %1107 = vmatpush1.bf16.msra.mxu0 0
    %1108 = vmatprep.subr.bf16.mxu0 0
    %1109 = vmatpush1.bf16.msra.mxu0 0
    %1110 = vmatprep.subr.bf16.mxu0 0
    %1111 = vmatpush1.bf16.msra.mxu0 0
    %1112 = vmatprep.subr.bf16.mxu0 0
    %1113 = vmatpush1.bf16.msra.mxu0 0
    %1114 = vmatprep.subr.bf16.mxu0 0
    %1115 = vmatpush1.bf16.msra.mxu0 0
    %1116 = vmatprep.mubr.bf16.mxu0 0
    %1117 = vmatmul.mubr.bf16.gmra.mrb[0].mxu0 %v1042
    %v1118 = vpop.f32.mrb[0].mxu0
    %v1119 = vadd.f32 0.0, %v1118
    %v1120 = vpop.f32.mrb[0].mxu0
    %v1121 = vadd.f32 0.0, %v1120
    %v1122 = vpop.f32.mrb[0].mxu0
    %v1123 = vpop.f32.mrb[0].mxu0
    %1124 = vdwg.mxu0
    %v1129 = vcombine.low %v1078, %v1080
    %v1130 = vcombine.low %v1119, %v1121
    %v1132 = vunpack.c.l.s4 1966171168
    %v1133 = vunpack.c.0.s8 %v1132
    %v1134 = vlaneseq
    %v1135 = vshrl.u32 %v1134, 7
    %v1136 = vsub.s32 %v1133, %v1135
    %v1137 = vrot.slane %v1129, %v1136
    %v1139 = vunpack.c.l.s4 1966171168
    %v1140 = vunpack.c.0.s8 %v1139
    %v1141 = vlaneseq
    %v1142 = vshrl.u32 %v1141, 7
    %v1143 = vsub.s32 %v1140, %v1142
    %v1144 = vrot.slane %v1130, %v1143
    %v1145 = vcombine.low %v1137, %v1144
    %v1147 = vunpack.c.l.s4 1966171168
    %v1148 = vunpack.c.0.s8 %v1147
    %v1149 = vlaneseq
    %v1150 = vshrl.u32 %v1149, 7
    %v1151 = vsub.s32 %v1148, %v1150
    %v1152 = vrot.slane %v1145, %v1151
    %v1154 = vadd.f32 %v1041, %v1152
    %v1155 = vxor.u32 %v1154, 2147483648
    %v1156 = vmul.f32 %v1155, 1.442695
    %v1157 = vpow.pop %v1156
    %v1158 = vadd.f32 %v1157, 1.0
    %v1159 = vrcp.pop %v1158
    %v1160 = vmul.f32 1.0, %v1159
    %v1162 = vrot.slane %v1154, 2
    %v1164 = vtanh.pop %v1162
    %v1165 = vrot.slane %v1154, 3
    %v1167 = vxor.u32 %v1165, 2147483648
    %v1168 = vmul.f32 %v1167, 1.442695
    %v1169 = vpow.pop %v1168
    %v1170 = vadd.f32 %v1169, 1.0
    %v1171 = vrcp.pop %v1170
    %v1172 = vmul.f32 1.0, %v1171
    %v1174 = vrot.slane %v1160, 1
    %v1176 = vmul.f32 %v1174, %v1037
    %v1177 = vmul.f32 %v1160, %v1164
    %v1178 = vadd.f32 %v1176, %v1177
    %v1179 = vtanh.pop %v1178
    %v1180 = vmul.f32 %v1172, %v1179
    %s1181 = scalar_lea.vmem [#allocation2], 5
    %v1182 = vld [vmem:[%s1181] ss:$8 sm:$0xf]
    %v1183 = vpack.c.bf16 %v1180, %v1180
    %1184 = vmatprep.subr.bf16.mxu0 %v416
    %1185 = vmatpush1.bf16.msra.mxu0 %v415
    %1186 = vmatprep.subr.bf16.mxu0 %v420
    %1187 = vmatpush1.bf16.msra.mxu0 %v419
    %1188 = vmatprep.subr.bf16.mxu0 %v424
    %1189 = vmatpush1.bf16.msra.mxu0 %v423
    %1190 = vmatprep.subr.bf16.mxu0 %v428
    %1191 = vmatpush1.bf16.msra.mxu0 %v427
    %1192 = vmatprep.subr.bf16.mxu0 %v432
    %1193 = vmatpush1.bf16.msra.mxu0 %v431
    %1194 = vmatprep.subr.bf16.mxu0 %v436
    %1195 = vmatpush1.bf16.msra.mxu0 %v435
    %1196 = vmatprep.subr.bf16.mxu0 %v440
    %1197 = vmatpush1.bf16.msra.mxu0 %v439
    %1198 = vmatprep.subr.bf16.mxu0 %v444
    %1199 = vmatpush1.bf16.msra.mxu0 %v443
    %1200 = vmatprep.subr.bf16.mxu0 0
    %1201 = vmatpush1.bf16.msra.mxu0 0
    %1202 = vmatprep.subr.bf16.mxu0 0
    %1203 = vmatpush1.bf16.msra.mxu0 0
    %1204 = vmatprep.subr.bf16.mxu0 0
    %1205 = vmatpush1.bf16.msra.mxu0 0
    %1206 = vmatprep.subr.bf16.mxu0 0
    %1207 = vmatpush1.bf16.msra.mxu0 0
    %1208 = vmatprep.subr.bf16.mxu0 0
    %1209 = vmatpush1.bf16.msra.mxu0 0
    %1210 = vmatprep.subr.bf16.mxu0 0
    %1211 = vmatpush1.bf16.msra.mxu0 0
    %1212 = vmatprep.subr.bf16.mxu0 0
    %1213 = vmatpush1.bf16.msra.mxu0 0
    %1214 = vmatprep.subr.bf16.mxu0 0
    %1215 = vmatpush1.bf16.msra.mxu0 0
    %1216 = vmatprep.mubr.bf16.mxu0 0
    %1217 = vmatmul.mubr.bf16.gmra.mrb[0].mxu0 %v1183
    %v1218 = vpop.f32.mrb[0].mxu0
    %v1219 = vadd.f32 0.0, %v1218
    %v1220 = vpop.f32.mrb[0].mxu0
    %v1221 = vadd.f32 0.0, %v1220
    %v1222 = vpop.f32.mrb[0].mxu0
    %v1223 = vpop.f32.mrb[0].mxu0
    %1224 = vdwg.mxu0
    %1225 = vmatprep.subr.bf16.mxu0 %v418
    %1226 = vmatpush1.bf16.msra.mxu0 %v417
    %1227 = vmatprep.subr.bf16.mxu0 %v422
    %1228 = vmatpush1.bf16.msra.mxu0 %v421
    %1229 = vmatprep.subr.bf16.mxu0 %v426
    %1230 = vmatpush1.bf16.msra.mxu0 %v425
    %1231 = vmatprep.subr.bf16.mxu0 %v430
    %1232 = vmatpush1.bf16.msra.mxu0 %v429
    %1233 = vmatprep.subr.bf16.mxu0 %v434
    %1234 = vmatpush1.bf16.msra.mxu0 %v433
    %1235 = vmatprep.subr.bf16.mxu0 %v438
    %1236 = vmatpush1.bf16.msra.mxu0 %v437
    %1237 = vmatprep.subr.bf16.mxu0 %v442
    %1238 = vmatpush1.bf16.msra.mxu0 %v441
    %1239 = vmatprep.subr.bf16.mxu0 %v446
    %1240 = vmatpush1.bf16.msra.mxu0 %v445
    %1241 = vmatprep.subr.bf16.mxu0 0
    %1242 = vmatpush1.bf16.msra.mxu0 0
    %1243 = vmatprep.subr.bf16.mxu0 0
    %1244 = vmatpush1.bf16.msra.mxu0 0
    %1245 = vmatprep.subr.bf16.mxu0 0
    %1246 = vmatpush1.bf16.msra.mxu0 0
    %1247 = vmatprep.subr.bf16.mxu0 0
    %1248 = vmatpush1.bf16.msra.mxu0 0
    %1249 = vmatprep.subr.bf16.mxu0 0
    %1250 = vmatpush1.bf16.msra.mxu0 0
    %1251 = vmatprep.subr.bf16.mxu0 0
    %1252 = vmatpush1.bf16.msra.mxu0 0
    %1253 = vmatprep.subr.bf16.mxu0 0
    %1254 = vmatpush1.bf16.msra.mxu0 0
    %1255 = vmatprep.subr.bf16.mxu0 0
    %1256 = vmatpush1.bf16.msra.mxu0 0
    %1257 = vmatprep.mubr.bf16.mxu0 0
    %1258 = vmatmul.mubr.bf16.gmra.mrb[0].mxu0 %v1183
    %v1259 = vpop.f32.mrb[0].mxu0
    %v1260 = vadd.f32 0.0, %v1259
    %v1261 = vpop.f32.mrb[0].mxu0
    %v1262 = vadd.f32 0.0, %v1261
    %v1263 = vpop.f32.mrb[0].mxu0
    %v1264 = vpop.f32.mrb[0].mxu0
    %1265 = vdwg.mxu0
    %v1270 = vcombine.low %v1219, %v1221
    %v1271 = vcombine.low %v1260, %v1262
    %v1273 = vunpack.c.l.s4 1966171168
    %v1274 = vunpack.c.0.s8 %v1273
    %v1275 = vlaneseq
    %v1276 = vshrl.u32 %v1275, 7
    %v1277 = vsub.s32 %v1274, %v1276
    %v1278 = vrot.slane %v1270, %v1277
    %v1280 = vunpack.c.l.s4 1966171168
    %v1281 = vunpack.c.0.s8 %v1280
    %v1282 = vlaneseq
    %v1283 = vshrl.u32 %v1282, 7
    %v1284 = vsub.s32 %v1281, %v1283
    %v1285 = vrot.slane %v1271, %v1284
    %v1286 = vcombine.low %v1278, %v1285
    %v1288 = vunpack.c.l.s4 1966171168
    %v1289 = vunpack.c.0.s8 %v1288
    %v1290 = vlaneseq
    %v1291 = vshrl.u32 %v1290, 7
    %v1292 = vsub.s32 %v1289, %v1291
    %v1293 = vrot.slane %v1286, %v1292
    %v1295 = vadd.f32 %v1182, %v1293
    %v1296 = vxor.u32 %v1295, 2147483648
    %v1297 = vmul.f32 %v1296, 1.442695
    %v1298 = vpow.pop %v1297
    %v1299 = vadd.f32 %v1298, 1.0
    %v1300 = vrcp.pop %v1299
    %v1301 = vmul.f32 1.0, %v1300
    %v1303 = vrot.slane %v1295, 2
    %v1305 = vtanh.pop %v1303
    %v1306 = vrot.slane %v1295, 3
    %v1308 = vxor.u32 %v1306, 2147483648
    %v1309 = vmul.f32 %v1308, 1.442695
    %v1310 = vpow.pop %v1309
    %v1311 = vadd.f32 %v1310, 1.0
    %v1312 = vrcp.pop %v1311
    %v1313 = vmul.f32 1.0, %v1312
    %v1315 = vrot.slane %v1301, 1
    %v1317 = vmul.f32 %v1315, %v1178
    %v1318 = vmul.f32 %v1301, %v1305
    %v1319 = vadd.f32 %v1317, %v1318
    %v1320 = vtanh.pop %v1319
    %v1321 = vmul.f32 %v1313, %v1320
    %s1322 = scalar_lea.vmem [#allocation2], 6
    %v1323 = vld [vmem:[%s1322] ss:$8 sm:$0xf]
    %v1324 = vpack.c.bf16 %v1321, %v1321
    %1325 = vmatprep.subr.bf16.mxu0 %v416
    %1326 = vmatpush1.bf16.msra.mxu0 %v415
    %1327 = vmatprep.subr.bf16.mxu0 %v420
    %1328 = vmatpush1.bf16.msra.mxu0 %v419
    %1329 = vmatprep.subr.bf16.mxu0 %v424
    %1330 = vmatpush1.bf16.msra.mxu0 %v423
    %1331 = vmatprep.subr.bf16.mxu0 %v428
    %1332 = vmatpush1.bf16.msra.mxu0 %v427
    %1333 = vmatprep.subr.bf16.mxu0 %v432
    %1334 = vmatpush1.bf16.msra.mxu0 %v431
    %1335 = vmatprep.subr.bf16.mxu0 %v436
    %1336 = vmatpush1.bf16.msra.mxu0 %v435
    %1337 = vmatprep.subr.bf16.mxu0 %v440
    %1338 = vmatpush1.bf16.msra.mxu0 %v439
    %1339 = vmatprep.subr.bf16.mxu0 %v444
    %1340 = vmatpush1.bf16.msra.mxu0 %v443
    %1341 = vmatprep.subr.bf16.mxu0 0
    %1342 = vmatpush1.bf16.msra.mxu0 0
    %1343 = vmatprep.subr.bf16.mxu0 0
    %1344 = vmatpush1.bf16.msra.mxu0 0
    %1345 = vmatprep.subr.bf16.mxu0 0
    %1346 = vmatpush1.bf16.msra.mxu0 0
    %1347 = vmatprep.subr.bf16.mxu0 0
    %1348 = vmatpush1.bf16.msra.mxu0 0
    %1349 = vmatprep.subr.bf16.mxu0 0
    %1350 = vmatpush1.bf16.msra.mxu0 0
    %1351 = vmatprep.subr.bf16.mxu0 0
    %1352 = vmatpush1.bf16.msra.mxu0 0
    %1353 = vmatprep.subr.bf16.mxu0 0
    %1354 = vmatpush1.bf16.msra.mxu0 0
    %1355 = vmatprep.subr.bf16.mxu0 0
    %1356 = vmatpush1.bf16.msra.mxu0 0
    %1357 = vmatprep.mubr.bf16.mxu0 0
    %1358 = vmatmul.mubr.bf16.gmra.mrb[0].mxu0 %v1324
    %v1359 = vpop.f32.mrb[0].mxu0
    %v1360 = vadd.f32 0.0, %v1359
    %v1361 = vpop.f32.mrb[0].mxu0
    %v1362 = vadd.f32 0.0, %v1361
    %v1363 = vpop.f32.mrb[0].mxu0
    %v1364 = vpop.f32.mrb[0].mxu0
    %1365 = vdwg.mxu0
    %1366 = vmatprep.subr.bf16.mxu0 %v418
    %1367 = vmatpush1.bf16.msra.mxu0 %v417
    %1368 = vmatprep.subr.bf16.mxu0 %v422
    %1369 = vmatpush1.bf16.msra.mxu0 %v421
    %1370 = vmatprep.subr.bf16.mxu0 %v426
    %1371 = vmatpush1.bf16.msra.mxu0 %v425
    %1372 = vmatprep.subr.bf16.mxu0 %v430
    %1373 = vmatpush1.bf16.msra.mxu0 %v429
    %1374 = vmatprep.subr.bf16.mxu0 %v434
    %1375 = vmatpush1.bf16.msra.mxu0 %v433
    %1376 = vmatprep.subr.bf16.mxu0 %v438
    %1377 = vmatpush1.bf16.msra.mxu0 %v437
    %1378 = vmatprep.subr.bf16.mxu0 %v442
    %1379 = vmatpush1.bf16.msra.mxu0 %v441
    %1380 = vmatprep.subr.bf16.mxu0 %v446
    %1381 = vmatpush1.bf16.msra.mxu0 %v445
    %1382 = vmatprep.subr.bf16.mxu0 0
    %1383 = vmatpush1.bf16.msra.mxu0 0
    %1384 = vmatprep.subr.bf16.mxu0 0
    %1385 = vmatpush1.bf16.msra.mxu0 0
    %1386 = vmatprep.subr.bf16.mxu0 0
    %1387 = vmatpush1.bf16.msra.mxu0 0
    %1388 = vmatprep.subr.bf16.mxu0 0
    %1389 = vmatpush1.bf16.msra.mxu0 0
    %1390 = vmatprep.subr.bf16.mxu0 0
    %1391 = vmatpush1.bf16.msra.mxu0 0
    %1392 = vmatprep.subr.bf16.mxu0 0
    %1393 = vmatpush1.bf16.msra.mxu0 0
    %1394 = vmatprep.subr.bf16.mxu0 0
    %1395 = vmatpush1.bf16.msra.mxu0 0
    %1396 = vmatprep.subr.bf16.mxu0 0
    %1397 = vmatpush1.bf16.msra.mxu0 0
    %1398 = vmatprep.mubr.bf16.mxu0 0
    %1399 = vmatmul.mubr.bf16.gmra.mrb[0].mxu0 %v1324
    %v1400 = vpop.f32.mrb[0].mxu0
    %v1401 = vadd.f32 0.0, %v1400
    %v1402 = vpop.f32.mrb[0].mxu0
    %v1403 = vadd.f32 0.0, %v1402
    %v1404 = vpop.f32.mrb[0].mxu0
    %v1405 = vpop.f32.mrb[0].mxu0
    %1406 = vdwg.mxu0
    %v1411 = vcombine.low %v1360, %v1362
    %v1412 = vcombine.low %v1401, %v1403
    %v1414 = vunpack.c.l.s4 1966171168
    %v1415 = vunpack.c.0.s8 %v1414
    %v1416 = vlaneseq
    %v1417 = vshrl.u32 %v1416, 7
    %v1418 = vsub.s32 %v1415, %v1417
    %v1419 = vrot.slane %v1411, %v1418
    %v1421 = vunpack.c.l.s4 1966171168
    %v1422 = vunpack.c.0.s8 %v1421
    %v1423 = vlaneseq
    %v1424 = vshrl.u32 %v1423, 7
    %v1425 = vsub.s32 %v1422, %v1424
    %v1426 = vrot.slane %v1412, %v1425
    %v1427 = vcombine.low %v1419, %v1426
    %v1429 = vunpack.c.l.s4 1966171168
    %v1430 = vunpack.c.0.s8 %v1429
    %v1431 = vlaneseq
    %v1432 = vshrl.u32 %v1431, 7
    %v1433 = vsub.s32 %v1430, %v1432
    %v1434 = vrot.slane %v1427, %v1433
    %v1436 = vadd.f32 %v1323, %v1434
    %v1437 = vxor.u32 %v1436, 2147483648
    %v1438 = vmul.f32 %v1437, 1.442695
    %v1439 = vpow.pop %v1438
    %v1440 = vadd.f32 %v1439, 1.0
    %v1441 = vrcp.pop %v1440
    %v1442 = vmul.f32 1.0, %v1441
    %v1444 = vrot.slane %v1436, 2
    %v1446 = vtanh.pop %v1444
    %v1447 = vrot.slane %v1436, 3
    %v1449 = vxor.u32 %v1447, 2147483648
    %v1450 = vmul.f32 %v1449, 1.442695
    %v1451 = vpow.pop %v1450
    %v1452 = vadd.f32 %v1451, 1.0
    %v1453 = vrcp.pop %v1452
    %v1454 = vmul.f32 1.0, %v1453
    %v1456 = vrot.slane %v1442, 1
    %v1458 = vmul.f32 %v1456, %v1319
    %v1459 = vmul.f32 %v1442, %v1446
    %v1460 = vadd.f32 %v1458, %v1459
    %v1461 = vtanh.pop %v1460
    %v1462 = vmul.f32 %v1454, %v1461
    %s1463 = scalar_lea.vmem [#allocation2], 7
    %v1464 = vld [vmem:[%s1463] ss:$8 sm:$0xf]
    %v1465 = vpack.c.bf16 %v1462, %v1462
    %1466 = vmatprep.subr.bf16.mxu0 %v416
    %1467 = vmatpush1.bf16.msra.mxu0 %v415
    %1468 = vmatprep.subr.bf16.mxu0 %v420
    %1469 = vmatpush1.bf16.msra.mxu0 %v419
    %1470 = vmatprep.subr.bf16.mxu0 %v424
    %1471 = vmatpush1.bf16.msra.mxu0 %v423
    %1472 = vmatprep.subr.bf16.mxu0 %v428
    %1473 = vmatpush1.bf16.msra.mxu0 %v427
    %1474 = vmatprep.subr.bf16.mxu0 %v432
    %1475 = vmatpush1.bf16.msra.mxu0 %v431
    %1476 = vmatprep.subr.bf16.mxu0 %v436
    %1477 = vmatpush1.bf16.msra.mxu0 %v435
    %1478 = vmatprep.subr.bf16.mxu0 %v440
    %1479 = vmatpush1.bf16.msra.mxu0 %v439
    %1480 = vmatprep.subr.bf16.mxu0 %v444
    %1481 = vmatpush1.bf16.msra.mxu0 %v443
    %1482 = vmatprep.subr.bf16.mxu0 0
    %1483 = vmatpush1.bf16.msra.mxu0 0
    %1484 = vmatprep.subr.bf16.mxu0 0
    %1485 = vmatpush1.bf16.msra.mxu0 0
    %1486 = vmatprep.subr.bf16.mxu0 0
    %1487 = vmatpush1.bf16.msra.mxu0 0
    %1488 = vmatprep.subr.bf16.mxu0 0
    %1489 = vmatpush1.bf16.msra.mxu0 0
    %1490 = vmatprep.subr.bf16.mxu0 0
    %1491 = vmatpush1.bf16.msra.mxu0 0
    %1492 = vmatprep.subr.bf16.mxu0 0
    %1493 = vmatpush1.bf16.msra.mxu0 0
    %1494 = vmatprep.subr.bf16.mxu0 0
    %1495 = vmatpush1.bf16.msra.mxu0 0
    %1496 = vmatprep.subr.bf16.mxu0 0
    %1497 = vmatpush1.bf16.msra.mxu0 0
    %1498 = vmatprep.mubr.bf16.mxu0 0
    %1499 = vmatmul.mubr.bf16.gmra.mrb[0].mxu0 %v1465
    %v1500 = vpop.f32.mrb[0].mxu0
    %v1501 = vadd.f32 0.0, %v1500
    %v1502 = vpop.f32.mrb[0].mxu0
    %v1503 = vadd.f32 0.0, %v1502
    %v1504 = vpop.f32.mrb[0].mxu0
    %v1505 = vpop.f32.mrb[0].mxu0
    %1506 = vdwg.mxu0
    %1507 = vmatprep.subr.bf16.mxu0 %v418
    %1508 = vmatpush1.bf16.msra.mxu0 %v417
    %1509 = vmatprep.subr.bf16.mxu0 %v422
    %1510 = vmatpush1.bf16.msra.mxu0 %v421
    %1511 = vmatprep.subr.bf16.mxu0 %v426
    %1512 = vmatpush1.bf16.msra.mxu0 %v425
    %1513 = vmatprep.subr.bf16.mxu0 %v430
    %1514 = vmatpush1.bf16.msra.mxu0 %v429
    %1515 = vmatprep.subr.bf16.mxu0 %v434
    %1516 = vmatpush1.bf16.msra.mxu0 %v433
    %1517 = vmatprep.subr.bf16.mxu0 %v438
    %1518 = vmatpush1.bf16.msra.mxu0 %v437
    %1519 = vmatprep.subr.bf16.mxu0 %v442
    %1520 = vmatpush1.bf16.msra.mxu0 %v441
    %1521 = vmatprep.subr.bf16.mxu0 %v446
    %1522 = vmatpush1.bf16.msra.mxu0 %v445
    %1523 = vmatprep.subr.bf16.mxu0 0
    %1524 = vmatpush1.bf16.msra.mxu0 0
    %1525 = vmatprep.subr.bf16.mxu0 0
    %1526 = vmatpush1.bf16.msra.mxu0 0
    %1527 = vmatprep.subr.bf16.mxu0 0
    %1528 = vmatpush1.bf16.msra.mxu0 0
    %1529 = vmatprep.subr.bf16.mxu0 0
    %1530 = vmatpush1.bf16.msra.mxu0 0
    %1531 = vmatprep.subr.bf16.mxu0 0
    %1532 = vmatpush1.bf16.msra.mxu0 0
    %1533 = vmatprep.subr.bf16.mxu0 0
    %1534 = vmatpush1.bf16.msra.mxu0 0
    %1535 = vmatprep.subr.bf16.mxu0 0
    %1536 = vmatpush1.bf16.msra.mxu0 0
    %1537 = vmatprep.subr.bf16.mxu0 0
    %1538 = vmatpush1.bf16.msra.mxu0 0
    %1539 = vmatprep.mubr.bf16.mxu0 0
    %1540 = vmatmul.mubr.bf16.gmra.mrb[0].mxu0 %v1465
    %v1541 = vpop.f32.mrb[0].mxu0
    %v1542 = vadd.f32 0.0, %v1541
    %v1543 = vpop.f32.mrb[0].mxu0
    %v1544 = vadd.f32 0.0, %v1543
    %v1545 = vpop.f32.mrb[0].mxu0
    %v1546 = vpop.f32.mrb[0].mxu0
    %1547 = vdwg.mxu0
    %v1552 = vcombine.low %v1501, %v1503
    %v1553 = vcombine.low %v1542, %v1544
    %v1555 = vunpack.c.l.s4 1966171168
    %v1556 = vunpack.c.0.s8 %v1555
    %v1557 = vlaneseq
    %v1558 = vshrl.u32 %v1557, 7
    %v1559 = vsub.s32 %v1556, %v1558
    %v1560 = vrot.slane %v1552, %v1559
    %v1562 = vunpack.c.l.s4 1966171168
    %v1563 = vunpack.c.0.s8 %v1562
    %v1564 = vlaneseq
    %v1565 = vshrl.u32 %v1564, 7
    %v1566 = vsub.s32 %v1563, %v1565
    %v1567 = vrot.slane %v1553, %v1566
    %v1568 = vcombine.low %v1560, %v1567
    %v1570 = vunpack.c.l.s4 1966171168
    %v1571 = vunpack.c.0.s8 %v1570
    %v1572 = vlaneseq
    %v1573 = vshrl.u32 %v1572, 7
    %v1574 = vsub.s32 %v1571, %v1573
    %v1575 = vrot.slane %v1568, %v1574
    %v1577 = vadd.f32 %v1464, %v1575
    %v1578 = vxor.u32 %v1577, 2147483648
    %v1579 = vmul.f32 %v1578, 1.442695
    %v1580 = vpow.pop %v1579
    %v1581 = vadd.f32 %v1580, 1.0
    %v1582 = vrcp.pop %v1581
    %v1583 = vmul.f32 1.0, %v1582
    %v1585 = vrot.slane %v1577, 2
    %v1587 = vtanh.pop %v1585
    %v1588 = vrot.slane %v1577, 3
    %v1590 = vxor.u32 %v1588, 2147483648
    %v1591 = vmul.f32 %v1590, 1.442695
    %v1592 = vpow.pop %v1591
    %v1593 = vadd.f32 %v1592, 1.0
    %v1594 = vrcp.pop %v1593
    %v1595 = vmul.f32 1.0, %v1594
    %v1597 = vrot.slane %v1583, 1
    %v1599 = vmul.f32 %v1597, %v1460
    %v1600 = vmul.f32 %v1583, %v1587
    %v1601 = vadd.f32 %v1599, %v1600
    %v1602 = vtanh.pop %v1601
    %v1603 = vmul.f32 %v1595, %v1602
    %v1605 = vlaneseq
    %v1606 = vshrl.u32 %v1605, 7
    %v1607 = vsub.s32 0, %v1606
    %v1608 = vrot.slane %v757, %v1607
    %v1611 = vlaneseq
    %v1612 = vshrl.u32 %v1611, 7
    %v1613 = vsub.s32 0, %v1612
    %v1614 = vrot.slane %v898, %v1613
    %v1617 = vlaneseq
    %v1618 = vshrl.u32 %v1617, 7
    %v1619 = vsub.s32 0, %v1618
    %v1620 = vrot.slane %v1039, %v1619
    %v1623 = vlaneseq
    %v1624 = vshrl.u32 %v1623, 7
    %v1625 = vsub.s32 0, %v1624
    %v1626 = vrot.slane %v1180, %v1625
    %v1629 = vlaneseq
    %v1630 = vshrl.u32 %v1629, 7
    %v1631 = vsub.s32 0, %v1630
    %v1632 = vrot.slane %v1321, %v1631
    %v1635 = vlaneseq
    %v1636 = vshrl.u32 %v1635, 7
    %v1637 = vsub.s32 0, %v1636
    %v1638 = vrot.slane %v1462, %v1637
    %v1641 = vlaneseq
    %v1642 = vshrl.u32 %v1641, 7
    %v1643 = vsub.s32 0, %v1642
    %v1644 = vrot.slane %v1603, %v1643
    %v1646 = vsel %vm135, %v616, %v1608
    %v1647 = vsel %vm137, %v1646, %v1614
    %v1648 = vsel %vm139, %v1647, %v1620
    %v1649 = vsel %vm141, %v1648, %v1626
    %v1650 = vsel %vm143, %v1649, %v1632
    %v1651 = vsel %vm145, %v1650, %v1638
    %v1652 = vsel %vm147, %v1651, %v1644
    %v1653 = vpack.c.bf16 %v1652, %v1652
    %v1654 = vld [vmem:[#allocation8] sm:$0xf]
    %v1655 = vld [vmem:[#allocation8 + $0x4] sm:$0xf]
    %v1656 = vld [vmem:[#allocation8 + $0x8] sm:$0xf]
    %v1657 = vld [vmem:[#allocation8 + $0xc] sm:$0xf]
    %v1658 = vld [vmem:[#allocation8 + $0x10] sm:$0xf]
    %v1659 = vld [vmem:[#allocation8 + $0x14] sm:$0xf]
    %v1660 = vld [vmem:[#allocation8 + $0x18] sm:$0xf]
    %v1661 = vld [vmem:[#allocation8 + $0x1c] sm:$0xf]
    %v1662 = vld [vmem:[#allocation8 + $0x20] sm:$0xf]
    %v1663 = vld [vmem:[#allocation8 + $0x24] sm:$0xf]
    %v1664 = vld [vmem:[#allocation8 + $0x28] sm:$0xf]
    %v1665 = vld [vmem:[#allocation8 + $0x2c] sm:$0xf]
    %v1666 = vld [vmem:[#allocation8 + $0x30] sm:$0xf]
    %v1667 = vld [vmem:[#allocation8 + $0x34] sm:$0xf]
    %v1668 = vld [vmem:[#allocation8 + $0x38] sm:$0xf]
    %v1669 = vld [vmem:[#allocation8 + $0x3c] sm:$0xf]
    %v1670 = vld [vmem:[%s6] sm:$0x1]
    %v1672 = vlaneseq
    %v1673 = vshrl.u32 %v1672, 7
    %v1674 = vsub.s32 0, %v1673
    %v1675 = vrot.slane %v1670, %v1674
    %v1693 = vunpack.c.l.b16 %v1654
    %v1694 = vunpack.c.l.b16 %v1655
    %v1695 = vunpack.c.l.b16 %v1656
    %v1696 = vunpack.c.l.b16 %v1657
    %v1697 = vunpack.c.l.b16 %v1658
    %v1698 = vunpack.c.l.b16 %v1659
    %v1699 = vunpack.c.l.b16 %v1660
    %v1700 = vunpack.c.l.b16 %v1661
    %v1701 = vunpack.c.l.b16 %v1662
    %v1702 = vunpack.c.l.b16 %v1663
    %v1703 = vunpack.c.l.b16 %v1664
    %v1704 = vunpack.c.l.b16 %v1665
    %v1705 = vunpack.c.l.b16 %v1666
    %v1706 = vunpack.c.l.b16 %v1667
    %v1707 = vunpack.c.l.b16 %v1668
    %v1708 = vunpack.c.l.b16 %v1669
    %v1709 = vpack.c.b16 %v1694, %v1693
    %v1710 = vpack.c.b16 %v1696, %v1695
    %v1711 = vpack.c.b16 %v1698, %v1697
    %v1712 = vpack.c.b16 %v1700, %v1699
    %v1713 = vpack.c.b16 %v1702, %v1701
    %v1714 = vpack.c.b16 %v1704, %v1703
    %v1715 = vpack.c.b16 %v1706, %v1705
    %v1716 = vpack.c.b16 %v1708, %v1707
    %1725 = vmatprep.subr.bf16.mxu0 0
    %1726 = vmatpush1.bf16.msra.mxu0 %v1709
    %1727 = vmatprep.subr.bf16.mxu0 0
    %1728 = vmatpush1.bf16.msra.mxu0 %v1710
    %1729 = vmatprep.subr.bf16.mxu0 0
    %1730 = vmatpush1.bf16.msra.mxu0 %v1711
    %1731 = vmatprep.subr.bf16.mxu0 0
    %1732 = vmatpush1.bf16.msra.mxu0 %v1712
    %1733 = vmatprep.subr.bf16.mxu0 0
    %1734 = vmatpush1.bf16.msra.mxu0 %v1713
    %1735 = vmatprep.subr.bf16.mxu0 0
    %1736 = vmatpush1.bf16.msra.mxu0 %v1714
    %1737 = vmatprep.subr.bf16.mxu0 0
    %1738 = vmatpush1.bf16.msra.mxu0 %v1715
    %1739 = vmatprep.subr.bf16.mxu0 0
    %1740 = vmatpush1.bf16.msra.mxu0 %v1716
    %1741 = vmatprep.subr.bf16.mxu0 0
    %1742 = vmatpush1.bf16.msra.mxu0 0
    %1743 = vmatprep.subr.bf16.mxu0 0
    %1744 = vmatpush1.bf16.msra.mxu0 0
    %1745 = vmatprep.subr.bf16.mxu0 0
    %1746 = vmatpush1.bf16.msra.mxu0 0
    %1747 = vmatprep.subr.bf16.mxu0 0
    %1748 = vmatpush1.bf16.msra.mxu0 0
    %1749 = vmatprep.subr.bf16.mxu0 0
    %1750 = vmatpush1.bf16.msra.mxu0 0
    %1751 = vmatprep.subr.bf16.mxu0 0
    %1752 = vmatpush1.bf16.msra.mxu0 0
    %1753 = vmatprep.subr.bf16.mxu0 0
    %1754 = vmatpush1.bf16.msra.mxu0 0
    %1755 = vmatprep.subr.bf16.mxu0 0
    %1756 = vmatpush1.bf16.msra.mxu0 0
    %1757 = vmatprep.mubr.bf16.mxu0 0
    %1758 = vmatmul.mubr.bf16.gmra.mrb[0].mxu0 %v1653
    %v1759 = vpop.f32.mrb[0].mxu0
    %v1760 = vadd.f32 %v1675, %v1759
    %v1761 = vpop.f32.mrb[0].mxu0
    %v1762 = vpop.f32.mrb[0].mxu0
    %v1763 = vpop.f32.mrb[0].mxu0
    %1764 = vdwg.mxu0
    %1765 = vmax.xlane.f32.xlu0 %v1760
    %v1766 = vpop.xlane.xlu0 %1765
    %v1767 = vsub.f32 %v1760, %v1766
    %v1768 = vmul.f32 %v1767, 1.442695
    %v1769 = vpow.pop %v1768
    %1770 = vadd.xlane.f32.xlu0 %v1769
    %v1771 = vpop.xlane.xlu0 %1770
    %v1772 = vlog2.pop %v1771
    %v1773 = vmul.f32 %v1772, 0.6931472
    %v1774 = vadd.f32 %v1766, %v1773
    %v1775 = vsub.f32 %v1760, %v1774
    %1776 = vst [vmem:[#allocation10] sm:$0xff] %v1775
    // Predicated region
    $region42: #{lstm_tagger_forward.1} parent=1 // pred_check
      _
    $region43: #{lstm_tagger_forward.1} parent=1 // pred_check_branch
      %1778 = sbr.rel (0) target = $region45
    $region44: #{lstm_tagger_forward.1} parent=1 // pred_region
      %s1780 = ssub.s32 128, 128
      %1781 = vsyncadd [#allocation5], %s1780
      %s1783 = sshll.u32 [#allocation10], 4
      %s1784 = int_to_ptr.vmem [resolvable:$true] %s1783
      %1786 = dma.vmem_to_hbm [thread:$0]  %s1784, 128, %s7, [#allocation5]
    $region45: #{lstm_tagger_forward.1} parent=1 // pred_fallthru
      _
    // Predicated region
    $region46: #{lstm_tagger_forward.1} parent=1 // pred_check
      _
    $region47: #{lstm_tagger_forward.1} parent=1 // pred_check_branch
      %1788 = sbr.rel (0) target = $region49
    $region48: #{lstm_tagger_forward.1} parent=1 // pred_region
      %1789 = dma.done [#allocation5], 128
    $region49: #{lstm_tagger_forward.1} parent=1 // pred_fallthru
      _
    %1790 = vsyncpa [#allocation4], 1
    %1791 = vsyncpa [#allocation9], 1
    %1792 = vsyncpa [#allocation5], 1
    %1793 = vsyncpa [#allocation6], 1

</llo_original>
